<compile_context>
chip_gen: v5e
topology: v5e:2x2
jax: 0.10.0
libtpu: 0.0.40
codegen_flags: <defaults>
</compile_context>

<pallas_src>
import jax
import jax.numpy as jnp
from jax.experimental import pallas as pl
from jax.experimental.pallas import tpu as pltpu

EPS = 1e-5  # nn.InstanceNorm2d default eps, affine=False


def _make_fused_residual_kernel(C, H, W):
    HW = H * W

    def kernel(x_ref, w_ref, o_ref):
        x = x_ref[0]                                   # (C, HW) lane-dense f32

        # Edge masks for reflection fix-ups (built once, reused by both stages).
        lane = jax.lax.broadcasted_iota(jnp.int32, (1, HW), 1)
        col = lane % W
        is_w_first = col == 0
        is_w_last = col == (W - 1)
        is_h_first = lane < W
        is_h_last = lane >= (H - 1) * W

        def conv3x3_instnorm(inp, stage):
            # Row (kh) taps: roll the flat lane axis by +/-W (XLU rotate), then
            # patch top/bottom rows to reproduce ReflectionPad2d(1) exactly
            # (row -1 -> row 1, row H -> row H-2).
            up = pltpu.roll(inp, W, axis=1)            # inp[h-1, :] (wraps at h=0)
            dn = pltpu.roll(inp, HW - W, axis=1)       # inp[h+1, :] (wraps at h=H-1)
            rows = (
                jnp.where(is_h_first, dn, up),         # kh=0 -> source row h-1
                inp,                                   # kh=1 -> source row h
                jnp.where(is_h_last, up, dn),          # kh=2 -> source row h+1
            )

            acc = None
            for kh in range(3):
                r = rows[kh]
                # Column (kw) taps: roll by +/-1 lane, patch left/right columns
                # (col -1 -> col 1, col W -> col W-2).
                left = pltpu.roll(r, 1, axis=1)        # r[:, w-1] (wraps at w=0)
                right = pltpu.roll(r, HW - 1, axis=1)  # r[:, w+1] (wraps at w=W-1)
                cols = (
                    jnp.where(is_w_first, right, left),   # kw=0
                    r,                                    # kw=1
                    jnp.where(is_w_last, left, right),    # kw=2
                )
                for kw in range(3):
                    term = jnp.dot(w_ref[stage, kh * 3 + kw], cols[kw],
                                   preferred_element_type=jnp.float32)
                    acc = term if acc is None else acc + term

            # InstanceNorm2d (affine=False). The conv bias is mathematically
            # cancelled by the mean subtraction, so it is never added.
            mu = jnp.mean(acc, axis=1, keepdims=True)
            var = jnp.mean(acc * acc, axis=1, keepdims=True) - mu * mu
            return (acc - mu) * jax.lax.rsqrt(var + EPS)

        h = jnp.maximum(conv3x3_instnorm(x, 0), 0.0)   # stage 1 + ReLU
        y = conv3x3_instnorm(h, 1)                     # stage 2 (stays in VMEM)
        o_ref[0] = x + y                               # residual add

    return kernel


def _reorder_weight(w):
    # (C_out, C_in, 3, 3) -> (9, C_out, C_in), tap index t = kh*3 + kw
    C_out, C_in = w.shape[0], w.shape[1]
    return jnp.transpose(w, (2, 3, 0, 1)).reshape(9, C_out, C_in)


def residual_block(x, w1, b1, w2, b2):
    # b1/b2 are accepted for signature parity with the PyTorch module but are
    # exactly cancelled by the affine-free InstanceNorm -> not passed to the
    # kernel (zero numerical change).
    del b1, b2
    N, C, H, W = x.shape
    HW = H * W

    x_flat = x.reshape(N, C, HW)                       # bit-identical row-major view
    w_stacked = jnp.stack([_reorder_weight(w1), _reorder_weight(w2)])  # (2,9,C,C)

    kernel = _make_fused_residual_kernel(C, H, W)

    flops = 2 * 2 * 9 * C * C * N * HW                 # 2 stages of 9 CxC x CxHW dots
    bytes_accessed = 4 * (2 * N * C * HW + 2 * 9 * C * C)

    out = pl.pallas_call(
        kernel,
        out_shape=jax.ShapeDtypeStruct((N, C, HW), jnp.float32),
        grid=(N,),
        in_specs=[
            pl.BlockSpec((1, C, HW), lambda n: (n, 0, 0)),
            pl.BlockSpec((2, 9, C, C), lambda n: (0, 0, 0, 0)),  # resident weights
        ],
        out_specs=pl.BlockSpec((1, C, HW), lambda n: (n, 0, 0)),
        compiler_params=pltpu.CompilerParams(
            dimension_semantics=("parallel",)),
        cost_estimate=pl.CostEstimate(
            flops=flops,
            transcendentals=2 * N * C,                 # rsqrt per channel per stage
            bytes_accessed=bytes_accessed),
    )(x_flat, w_stacked)

    return out.reshape(N, C, H, W)


def _reference_residual_block(x, w1, b1, w2, b2):
    """Plain-JAX reference (mirrors the PyTorch module op-for-op)."""
    def stage(a, w, b, relu):
        ap = jnp.pad(a, ((0, 0), (0, 0), (1, 1), (1, 1)), mode="reflect")
        y = jax.lax.conv_general_dilated(
            ap, w, window_strides=(1, 1), padding="VALID",
            dimension_numbers=("NCHW", "OIHW", "NCHW"),
            precision=jax.lax.Precision.HIGHEST,
        ) + b[None, :, None, None]
        mu = jnp.mean(y, axis=(2, 3), keepdims=True)
        var = jnp.mean((y - mu) ** 2, axis=(2, 3), keepdims=True)
        y = (y - mu) * jax.lax.rsqrt(var + EPS)
        return jnp.maximum(y, 0.0) if relu else y

    h = stage(x, w1, b1, True)
    return x + stage(h, w2, b2, False)


if __name__ == "__main__":
    N, C, H, W = 2, 4, 16, 16
    key = jax.random.PRNGKey(0)
    kx, kw1, kb1, kw2, kb2 = jax.random.split(key, 5)

    x = jax.random.normal(kx, (N, C, H, W), dtype=jnp.float32)

    # PyTorch-style conv init: uniform(-sqrt(k), sqrt(k)), k = 1/(C_in*3*3)
    bound = (1.0 / (C * 3 * 3)) ** 0.5
    w1 = jax.random.uniform(kw1, (C, C, 3, 3), jnp.float32, -bound, bound)
    b1 = jax.random.uniform(kb1, (C,), jnp.float32, -bound, bound)
    w2 = jax.random.uniform(kw2, (C, C, 3, 3), jnp.float32, -bound, bound)
    b2 = jax.random.uniform(kb2, (C,), jnp.float32, -bound, bound)

    out = residual_block(x, w1, b1, w2, b2)
    jax.block_until_ready(out)
    assert out.shape == (N, C, H, W) and out.dtype == jnp.float32

    # Correctness check against the plain-JAX reference (loose tolerance to
    # cover MXU f32 multi-pass vs HIGHEST-precision reference; structural bugs
    # in the reflection/roll logic would produce O(1) errors).
    ref = _reference_residual_block(x, w1, b1, w2, b2)
    max_err = float(jnp.max(jnp.abs(out - ref)))
    assert max_err < 2e-2, f"max abs error vs reference: {max_err}"

    print("KERNEL_OK")
</pallas_src>

<mosaic_0001>
module attributes {stable_mosaic.version = 11 : i64} {
  func.func @kernel(%arg0: i32, %arg1: memref<1x4x256xf32, #tpu.memory_space<vmem>>, %arg2: memref<2x9x4x4xf32, #tpu.memory_space<vmem>>, %arg3: memref<1x4x256xf32, #tpu.memory_space<vmem>>) attributes {dimension_semantics = [#tpu.dimension_semantics<parallel>], iteration_bounds = array<i64: 2>, scalar_prefetch = 0 : i64, scratch_operands = 0 : i64, tpu.core_type = #tpu.core_type<tc>, window_params = [{transform_indices = @transform_0, window_bounds = array<i64: 1, 4, 256>}, {pipeline_mode = #tpu.pipeline_mode<synchronous>, transform_indices = @transform_1, window_bounds = array<i64: 2, 9, 4, 4>}, {transform_indices = @transform_2, window_bounds = array<i64: 1, 4, 256>}]} {
    %c0 = arith.constant 0 : index
    %c0_0 = arith.constant 0 : index
    %c0_1 = arith.constant 0 : index
    %0 = vector.load %arg1[%c0, %c0_0, %c0_1] : memref<1x4x256xf32, #tpu.memory_space<vmem>>, vector<1x4x256xf32>
    %1 = vector.shape_cast %0 : vector<1x4x256xf32> to vector<4x256xf32>
    %2 = tpu.iota {dimensions = array<i32: 1>} : vector<1x256xi32>
    %c16_i32 = arith.constant 16 : i32
    %c0_i32 = arith.constant 0 : i32
    %3 = arith.cmpi eq, %c16_i32, %c0_i32 : i32
    %c1_i32 = arith.constant 1 : i32
    %4 = arith.select %3, %c1_i32, %c16_i32 : i32
    %5 = vector.broadcast %4 : i32 to vector<1x256xi32>
    %6 = arith.remsi %2, %5 : vector<1x256xi32>
    %c0_i32_2 = arith.constant 0 : i32
    %7 = vector.broadcast %c0_i32_2 : i32 to vector<1x256xi32>
    %8 = arith.cmpi ne, %6, %7 : vector<1x256xi32>
    %c0_i32_3 = arith.constant 0 : i32
    %9 = vector.broadcast %c0_i32_3 : i32 to vector<1x256xi32>
    %10 = arith.cmpi slt, %6, %9 : vector<1x256xi32>
    %c0_i32_4 = arith.constant 0 : i32
    %11 = arith.cmpi slt, %4, %c0_i32_4 : i32
    %12 = vector.broadcast %11 : i1 to vector<1x256xi1>
    %13 = vector.broadcast %12 : vector<1x256xi1> to vector<1x256xi1>
    %14 = arith.xori %10, %13 : vector<1x256xi1>
    %15 = arith.andi %14, %8 : vector<1x256xi1>
    %16 = vector.broadcast %4 : i32 to vector<1x256xi32>
    %17 = arith.addi %6, %16 : vector<1x256xi32>
    %18 = arith.select %15, %17, %6 : vector<1x256xi1>, vector<1x256xi32>
    %c0_i32_5 = arith.constant 0 : i32
    %19 = vector.broadcast %c0_i32_5 : i32 to vector<1x256xi32>
    %20 = arith.cmpi eq, %18, %19 : vector<1x256xi32>
    %c15_i32 = arith.constant 15 : i32
    %21 = vector.broadcast %c15_i32 : i32 to vector<1x256xi32>
    %22 = arith.cmpi eq, %18, %21 : vector<1x256xi32>
    %c16_i32_6 = arith.constant 16 : i32
    %23 = vector.broadcast %c16_i32_6 : i32 to vector<1x256xi32>
    %24 = arith.cmpi slt, %2, %23 : vector<1x256xi32>
    %c240_i32 = arith.constant 240 : i32
    %25 = vector.broadcast %c240_i32 : i32 to vector<1x256xi32>
    %26 = arith.cmpi sge, %2, %25 : vector<1x256xi32>
    %c16_i32_7 = arith.constant 16 : i32
    %27 = tpu.dynamic_rotate %1 by %c16_i32_7 dim 1 : vector<4x256xf32>, i32 -> vector<4x256xf32>
    %c240_i32_8 = arith.constant 240 : i32
    %28 = tpu.dynamic_rotate %1 by %c240_i32_8 dim 1 : vector<4x256xf32>, i32 -> vector<4x256xf32>
    %29 = vector.shape_cast %24 : vector<1x256xi1> to vector<1x256xi1>
    %30 = vector.broadcast %29 : vector<1x256xi1> to vector<4x256xi1>
    %31 = arith.select %30, %28, %27 : vector<4x256xi1>, vector<4x256xf32>
    %32 = vector.shape_cast %26 : vector<1x256xi1> to vector<1x256xi1>
    %33 = vector.broadcast %32 : vector<1x256xi1> to vector<4x256xi1>
    %34 = arith.select %33, %27, %28 : vector<4x256xi1>, vector<4x256xf32>
    %c1_i32_9 = arith.constant 1 : i32
    %35 = tpu.dynamic_rotate %31 by %c1_i32_9 dim 1 : vector<4x256xf32>, i32 -> vector<4x256xf32>
    %c255_i32 = arith.constant 255 : i32
    %36 = tpu.dynamic_rotate %31 by %c255_i32 dim 1 : vector<4x256xf32>, i32 -> vector<4x256xf32>
    %37 = vector.shape_cast %20 : vector<1x256xi1> to vector<1x256xi1>
    %38 = vector.broadcast %37 : vector<1x256xi1> to vector<4x256xi1>
    %39 = arith.select %38, %36, %35 : vector<4x256xi1>, vector<4x256xf32>
    %40 = vector.shape_cast %22 : vector<1x256xi1> to vector<1x256xi1>
    %41 = vector.broadcast %40 : vector<1x256xi1> to vector<4x256xi1>
    %42 = arith.select %41, %35, %36 : vector<4x256xi1>, vector<4x256xf32>
    %c0_10 = arith.constant 0 : index
    %c0_11 = arith.constant 0 : index
    %c0_12 = arith.constant 0 : index
    %c0_13 = arith.constant 0 : index
    %43 = vector.load %arg2[%c0_10, %c0_11, %c0_12, %c0_13] : memref<2x9x4x4xf32, #tpu.memory_space<vmem>>, vector<1x1x4x4xf32>
    %44 = vector.shape_cast %43 : vector<1x1x4x4xf32> to vector<4x4xf32>
    %cst = arith.constant dense<0.000000e+00> : vector<4x256xf32>
    %45 = tpu.matmul %44, %39, %cst {dimension_numbers = #tpu.dot_dimension_numbers<[1], [0], [0], [1], [0, 0, 1, 1], [], []>} : vector<4x4xf32>, vector<4x256xf32>, vector<4x256xf32> -> vector<4x256xf32>
    %c0_14 = arith.constant 0 : index
    %c1 = arith.constant 1 : index
    %c0_15 = arith.constant 0 : index
    %c0_16 = arith.constant 0 : index
    %46 = vector.load %arg2[%c0_14, %c1, %c0_15, %c0_16] : memref<2x9x4x4xf32, #tpu.memory_space<vmem>>, vector<1x1x4x4xf32>
    %47 = vector.shape_cast %46 : vector<1x1x4x4xf32> to vector<4x4xf32>
    %cst_17 = arith.constant dense<0.000000e+00> : vector<4x256xf32>
    %48 = tpu.matmul %47, %31, %cst_17 {dimension_numbers = #tpu.dot_dimension_numbers<[1], [0], [0], [1], [0, 0, 1, 1], [], []>} : vector<4x4xf32>, vector<4x256xf32>, vector<4x256xf32> -> vector<4x256xf32>
    %49 = arith.addf %45, %48 : vector<4x256xf32>
    %c0_18 = arith.constant 0 : index
    %c2 = arith.constant 2 : index
    %c0_19 = arith.constant 0 : index
    %c0_20 = arith.constant 0 : index
    %50 = vector.load %arg2[%c0_18, %c2, %c0_19, %c0_20] : memref<2x9x4x4xf32, #tpu.memory_space<vmem>>, vector<1x1x4x4xf32>
    %51 = vector.shape_cast %50 : vector<1x1x4x4xf32> to vector<4x4xf32>
    %cst_21 = arith.constant dense<0.000000e+00> : vector<4x256xf32>
    %52 = tpu.matmul %51, %42, %cst_21 {dimension_numbers = #tpu.dot_dimension_numbers<[1], [0], [0], [1], [0, 0, 1, 1], [], []>} : vector<4x4xf32>, vector<4x256xf32>, vector<4x256xf32> -> vector<4x256xf32>
    %53 = arith.addf %49, %52 : vector<4x256xf32>
    %c1_i32_22 = arith.constant 1 : i32
    %54 = tpu.dynamic_rotate %1 by %c1_i32_22 dim 1 : vector<4x256xf32>, i32 -> vector<4x256xf32>
    %c255_i32_23 = arith.constant 255 : i32
    %55 = tpu.dynamic_rotate %1 by %c255_i32_23 dim 1 : vector<4x256xf32>, i32 -> vector<4x256xf32>
    %56 = vector.shape_cast %20 : vector<1x256xi1> to vector<1x256xi1>
    %57 = vector.broadcast %56 : vector<1x256xi1> to vector<4x256xi1>
    %58 = arith.select %57, %55, %54 : vector<4x256xi1>, vector<4x256xf32>
    %59 = vector.shape_cast %22 : vector<1x256xi1> to vector<1x256xi1>
    %60 = vector.broadcast %59 : vector<1x256xi1> to vector<4x256xi1>
    %61 = arith.select %60, %54, %55 : vector<4x256xi1>, vector<4x256xf32>
    %c0_24 = arith.constant 0 : index
    %c3 = arith.constant 3 : index
    %c0_25 = arith.constant 0 : index
    %c0_26 = arith.constant 0 : index
    %62 = vector.load %arg2[%c0_24, %c3, %c0_25, %c0_26] : memref<2x9x4x4xf32, #tpu.memory_space<vmem>>, vector<1x1x4x4xf32>
    %63 = vector.shape_cast %62 : vector<1x1x4x4xf32> to vector<4x4xf32>
    %cst_27 = arith.constant dense<0.000000e+00> : vector<4x256xf32>
    %64 = tpu.matmul %63, %58, %cst_27 {dimension_numbers = #tpu.dot_dimension_numbers<[1], [0], [0], [1], [0, 0, 1, 1], [], []>} : vector<4x4xf32>, vector<4x256xf32>, vector<4x256xf32> -> vector<4x256xf32>
    %65 = arith.addf %53, %64 : vector<4x256xf32>
    %c0_28 = arith.constant 0 : index
    %c4 = arith.constant 4 : index
    %c0_29 = arith.constant 0 : index
    %c0_30 = arith.constant 0 : index
    %66 = vector.load %arg2[%c0_28, %c4, %c0_29, %c0_30] : memref<2x9x4x4xf32, #tpu.memory_space<vmem>>, vector<1x1x4x4xf32>
    %67 = vector.shape_cast %66 : vector<1x1x4x4xf32> to vector<4x4xf32>
    %cst_31 = arith.constant dense<0.000000e+00> : vector<4x256xf32>
    %68 = tpu.matmul %67, %1, %cst_31 {dimension_numbers = #tpu.dot_dimension_numbers<[1], [0], [0], [1], [0, 0, 1, 1], [], []>} : vector<4x4xf32>, vector<4x256xf32>, vector<4x256xf32> -> vector<4x256xf32>
    %69 = arith.addf %65, %68 : vector<4x256xf32>
    %c0_32 = arith.constant 0 : index
    %c5 = arith.constant 5 : index
    %c0_33 = arith.constant 0 : index
    %c0_34 = arith.constant 0 : index
    %70 = vector.load %arg2[%c0_32, %c5, %c0_33, %c0_34] : memref<2x9x4x4xf32, #tpu.memory_space<vmem>>, vector<1x1x4x4xf32>
    %71 = vector.shape_cast %70 : vector<1x1x4x4xf32> to vector<4x4xf32>
    %cst_35 = arith.constant dense<0.000000e+00> : vector<4x256xf32>
    %72 = tpu.matmul %71, %61, %cst_35 {dimension_numbers = #tpu.dot_dimension_numbers<[1], [0], [0], [1], [0, 0, 1, 1], [], []>} : vector<4x4xf32>, vector<4x256xf32>, vector<4x256xf32> -> vector<4x256xf32>
    %73 = arith.addf %69, %72 : vector<4x256xf32>
    %c1_i32_36 = arith.constant 1 : i32
    %74 = tpu.dynamic_rotate %34 by %c1_i32_36 dim 1 : vector<4x256xf32>, i32 -> vector<4x256xf32>
    %c255_i32_37 = arith.constant 255 : i32
    %75 = tpu.dynamic_rotate %34 by %c255_i32_37 dim 1 : vector<4x256xf32>, i32 -> vector<4x256xf32>
    %76 = vector.shape_cast %20 : vector<1x256xi1> to vector<1x256xi1>
    %77 = vector.broadcast %76 : vector<1x256xi1> to vector<4x256xi1>
    %78 = arith.select %77, %75, %74 : vector<4x256xi1>, vector<4x256xf32>
    %79 = vector.shape_cast %22 : vector<1x256xi1> to vector<1x256xi1>
    %80 = vector.broadcast %79 : vector<1x256xi1> to vector<4x256xi1>
    %81 = arith.select %80, %74, %75 : vector<4x256xi1>, vector<4x256xf32>
    %c0_38 = arith.constant 0 : index
    %c6 = arith.constant 6 : index
    %c0_39 = arith.constant 0 : index
    %c0_40 = arith.constant 0 : index
    %82 = vector.load %arg2[%c0_38, %c6, %c0_39, %c0_40] : memref<2x9x4x4xf32, #tpu.memory_space<vmem>>, vector<1x1x4x4xf32>
    %83 = vector.shape_cast %82 : vector<1x1x4x4xf32> to vector<4x4xf32>
    %cst_41 = arith.constant dense<0.000000e+00> : vector<4x256xf32>
    %84 = tpu.matmul %83, %78, %cst_41 {dimension_numbers = #tpu.dot_dimension_numbers<[1], [0], [0], [1], [0, 0, 1, 1], [], []>} : vector<4x4xf32>, vector<4x256xf32>, vector<4x256xf32> -> vector<4x256xf32>
    %85 = arith.addf %73, %84 : vector<4x256xf32>
    %c0_42 = arith.constant 0 : index
    %c7 = arith.constant 7 : index
    %c0_43 = arith.constant 0 : index
    %c0_44 = arith.constant 0 : index
    %86 = vector.load %arg2[%c0_42, %c7, %c0_43, %c0_44] : memref<2x9x4x4xf32, #tpu.memory_space<vmem>>, vector<1x1x4x4xf32>
    %87 = vector.shape_cast %86 : vector<1x1x4x4xf32> to vector<4x4xf32>
    %cst_45 = arith.constant dense<0.000000e+00> : vector<4x256xf32>
    %88 = tpu.matmul %87, %34, %cst_45 {dimension_numbers = #tpu.dot_dimension_numbers<[1], [0], [0], [1], [0, 0, 1, 1], [], []>} : vector<4x4xf32>, vector<4x256xf32>, vector<4x256xf32> -> vector<4x256xf32>
    %89 = arith.addf %85, %88 : vector<4x256xf32>
    %c0_46 = arith.constant 0 : index
    %c8 = arith.constant 8 : index
    %c0_47 = arith.constant 0 : index
    %c0_48 = arith.constant 0 : index
    %90 = vector.load %arg2[%c0_46, %c8, %c0_47, %c0_48] : memref<2x9x4x4xf32, #tpu.memory_space<vmem>>, vector<1x1x4x4xf32>
    %91 = vector.shape_cast %90 : vector<1x1x4x4xf32> to vector<4x4xf32>
    %cst_49 = arith.constant dense<0.000000e+00> : vector<4x256xf32>
    %92 = tpu.matmul %91, %81, %cst_49 {dimension_numbers = #tpu.dot_dimension_numbers<[1], [0], [0], [1], [0, 0, 1, 1], [], []>} : vector<4x4xf32>, vector<4x256xf32>, vector<4x256xf32> -> vector<4x256xf32>
    %93 = arith.addf %89, %92 : vector<4x256xf32>
    %cst_50 = arith.constant dense<0.000000e+00> : vector<4xf32>
    %94 = vector.multi_reduction <add>, %93, %cst_50 [1] : vector<4x256xf32> to vector<4xf32>
    %95 = vector.shape_cast %94 : vector<4xf32> to vector<4x1xf32>
    %cst_51 = arith.constant 2.560000e+02 : f32
    %96 = vector.broadcast %cst_51 : f32 to vector<4x1xf32>
    %97 = arith.divf %95, %96 : vector<4x1xf32>
    %98 = arith.mulf %93, %93 : vector<4x256xf32>
    %cst_52 = arith.constant dense<0.000000e+00> : vector<4xf32>
    %99 = vector.multi_reduction <add>, %98, %cst_52 [1] : vector<4x256xf32> to vector<4xf32>
    %100 = vector.shape_cast %99 : vector<4xf32> to vector<4x1xf32>
    %cst_53 = arith.constant 2.560000e+02 : f32
    %101 = vector.broadcast %cst_53 : f32 to vector<4x1xf32>
    %102 = arith.divf %100, %101 : vector<4x1xf32>
    %103 = arith.mulf %97, %97 : vector<4x1xf32>
    %104 = arith.subf %102, %103 : vector<4x1xf32>
    %105 = vector.broadcast %97 : vector<4x1xf32> to vector<4x256xf32>
    %106 = arith.subf %93, %105 : vector<4x256xf32>
    %cst_54 = arith.constant 9.99999974E-6 : f32
    %107 = vector.broadcast %cst_54 : f32 to vector<4x1xf32>
    %108 = arith.addf %104, %107 : vector<4x1xf32>
    %109 = math.rsqrt %108 : vector<4x1xf32>
    %110 = vector.broadcast %109 : vector<4x1xf32> to vector<4x256xf32>
    %111 = arith.mulf %106, %110 : vector<4x256xf32>
    %cst_55 = arith.constant 0.000000e+00 : f32
    %112 = vector.broadcast %cst_55 : f32 to vector<4x256xf32>
    %113 = arith.maximumf %111, %112 : vector<4x256xf32>
    %c16_i32_56 = arith.constant 16 : i32
    %114 = tpu.dynamic_rotate %113 by %c16_i32_56 dim 1 : vector<4x256xf32>, i32 -> vector<4x256xf32>
    %c240_i32_57 = arith.constant 240 : i32
    %115 = tpu.dynamic_rotate %113 by %c240_i32_57 dim 1 : vector<4x256xf32>, i32 -> vector<4x256xf32>
    %116 = vector.shape_cast %24 : vector<1x256xi1> to vector<1x256xi1>
    %117 = vector.broadcast %116 : vector<1x256xi1> to vector<4x256xi1>
    %118 = arith.select %117, %115, %114 : vector<4x256xi1>, vector<4x256xf32>
    %119 = vector.shape_cast %26 : vector<1x256xi1> to vector<1x256xi1>
    %120 = vector.broadcast %119 : vector<1x256xi1> to vector<4x256xi1>
    %121 = arith.select %120, %114, %115 : vector<4x256xi1>, vector<4x256xf32>
    %c1_i32_58 = arith.constant 1 : i32
    %122 = tpu.dynamic_rotate %118 by %c1_i32_58 dim 1 : vector<4x256xf32>, i32 -> vector<4x256xf32>
    %c255_i32_59 = arith.constant 255 : i32
    %123 = tpu.dynamic_rotate %118 by %c255_i32_59 dim 1 : vector<4x256xf32>, i32 -> vector<4x256xf32>
    %124 = vector.shape_cast %20 : vector<1x256xi1> to vector<1x256xi1>
    %125 = vector.broadcast %124 : vector<1x256xi1> to vector<4x256xi1>
    %126 = arith.select %125, %123, %122 : vector<4x256xi1>, vector<4x256xf32>
    %127 = vector.shape_cast %22 : vector<1x256xi1> to vector<1x256xi1>
    %128 = vector.broadcast %127 : vector<1x256xi1> to vector<4x256xi1>
    %129 = arith.select %128, %122, %123 : vector<4x256xi1>, vector<4x256xf32>
    %c1_60 = arith.constant 1 : index
    %c0_61 = arith.constant 0 : index
    %c0_62 = arith.constant 0 : index
    %c0_63 = arith.constant 0 : index
    %130 = vector.load %arg2[%c1_60, %c0_61, %c0_62, %c0_63] : memref<2x9x4x4xf32, #tpu.memory_space<vmem>>, vector<1x1x4x4xf32>
    %131 = vector.shape_cast %130 : vector<1x1x4x4xf32> to vector<4x4xf32>
    %cst_64 = arith.constant dense<0.000000e+00> : vector<4x256xf32>
    %132 = tpu.matmul %131, %126, %cst_64 {dimension_numbers = #tpu.dot_dimension_numbers<[1], [0], [0], [1], [0, 0, 1, 1], [], []>} : vector<4x4xf32>, vector<4x256xf32>, vector<4x256xf32> -> vector<4x256xf32>
    %c1_65 = arith.constant 1 : index
    %c1_66 = arith.constant 1 : index
    %c0_67 = arith.constant 0 : index
    %c0_68 = arith.constant 0 : index
    %133 = vector.load %arg2[%c1_65, %c1_66, %c0_67, %c0_68] : memref<2x9x4x4xf32, #tpu.memory_space<vmem>>, vector<1x1x4x4xf32>
    %134 = vector.shape_cast %133 : vector<1x1x4x4xf32> to vector<4x4xf32>
    %cst_69 = arith.constant dense<0.000000e+00> : vector<4x256xf32>
    %135 = tpu.matmul %134, %118, %cst_69 {dimension_numbers = #tpu.dot_dimension_numbers<[1], [0], [0], [1], [0, 0, 1, 1], [], []>} : vector<4x4xf32>, vector<4x256xf32>, vector<4x256xf32> -> vector<4x256xf32>
    %136 = arith.addf %132, %135 : vector<4x256xf32>
    %c1_70 = arith.constant 1 : index
    %c2_71 = arith.constant 2 : index
    %c0_72 = arith.constant 0 : index
    %c0_73 = arith.constant 0 : index
    %137 = vector.load %arg2[%c1_70, %c2_71, %c0_72, %c0_73] : memref<2x9x4x4xf32, #tpu.memory_space<vmem>>, vector<1x1x4x4xf32>
    %138 = vector.shape_cast %137 : vector<1x1x4x4xf32> to vector<4x4xf32>
    %cst_74 = arith.constant dense<0.000000e+00> : vector<4x256xf32>
    %139 = tpu.matmul %138, %129, %cst_74 {dimension_numbers = #tpu.dot_dimension_numbers<[1], [0], [0], [1], [0, 0, 1, 1], [], []>} : vector<4x4xf32>, vector<4x256xf32>, vector<4x256xf32> -> vector<4x256xf32>
    %140 = arith.addf %136, %139 : vector<4x256xf32>
    %c1_i32_75 = arith.constant 1 : i32
    %141 = tpu.dynamic_rotate %113 by %c1_i32_75 dim 1 : vector<4x256xf32>, i32 -> vector<4x256xf32>
    %c255_i32_76 = arith.constant 255 : i32
    %142 = tpu.dynamic_rotate %113 by %c255_i32_76 dim 1 : vector<4x256xf32>, i32 -> vector<4x256xf32>
    %143 = vector.shape_cast %20 : vector<1x256xi1> to vector<1x256xi1>
    %144 = vector.broadcast %143 : vector<1x256xi1> to vector<4x256xi1>
    %145 = arith.select %144, %142, %141 : vector<4x256xi1>, vector<4x256xf32>
    %146 = vector.shape_cast %22 : vector<1x256xi1> to vector<1x256xi1>
    %147 = vector.broadcast %146 : vector<1x256xi1> to vector<4x256xi1>
    %148 = arith.select %147, %141, %142 : vector<4x256xi1>, vector<4x256xf32>
    %c1_77 = arith.constant 1 : index
    %c3_78 = arith.constant 3 : index
    %c0_79 = arith.constant 0 : index
    %c0_80 = arith.constant 0 : index
    %149 = vector.load %arg2[%c1_77, %c3_78, %c0_79, %c0_80] : memref<2x9x4x4xf32, #tpu.memory_space<vmem>>, vector<1x1x4x4xf32>
    %150 = vector.shape_cast %149 : vector<1x1x4x4xf32> to vector<4x4xf32>
    %cst_81 = arith.constant dense<0.000000e+00> : vector<4x256xf32>
    %151 = tpu.matmul %150, %145, %cst_81 {dimension_numbers = #tpu.dot_dimension_numbers<[1], [0], [0], [1], [0, 0, 1, 1], [], []>} : vector<4x4xf32>, vector<4x256xf32>, vector<4x256xf32> -> vector<4x256xf32>
    %152 = arith.addf %140, %151 : vector<4x256xf32>
    %c1_82 = arith.constant 1 : index
    %c4_83 = arith.constant 4 : index
    %c0_84 = arith.constant 0 : index
    %c0_85 = arith.constant 0 : index
    %153 = vector.load %arg2[%c1_82, %c4_83, %c0_84, %c0_85] : memref<2x9x4x4xf32, #tpu.memory_space<vmem>>, vector<1x1x4x4xf32>
    %154 = vector.shape_cast %153 : vector<1x1x4x4xf32> to vector<4x4xf32>
    %cst_86 = arith.constant dense<0.000000e+00> : vector<4x256xf32>
    %155 = tpu.matmul %154, %113, %cst_86 {dimension_numbers = #tpu.dot_dimension_numbers<[1], [0], [0], [1], [0, 0, 1, 1], [], []>} : vector<4x4xf32>, vector<4x256xf32>, vector<4x256xf32> -> vector<4x256xf32>
    %156 = arith.addf %152, %155 : vector<4x256xf32>
    %c1_87 = arith.constant 1 : index
    %c5_88 = arith.constant 5 : index
    %c0_89 = arith.constant 0 : index
    %c0_90 = arith.constant 0 : index
    %157 = vector.load %arg2[%c1_87, %c5_88, %c0_89, %c0_90] : memref<2x9x4x4xf32, #tpu.memory_space<vmem>>, vector<1x1x4x4xf32>
    %158 = vector.shape_cast %157 : vector<1x1x4x4xf32> to vector<4x4xf32>
    %cst_91 = arith.constant dense<0.000000e+00> : vector<4x256xf32>
    %159 = tpu.matmul %158, %148, %cst_91 {dimension_numbers = #tpu.dot_dimension_numbers<[1], [0], [0], [1], [0, 0, 1, 1], [], []>} : vector<4x4xf32>, vector<4x256xf32>, vector<4x256xf32> -> vector<4x256xf32>
    %160 = arith.addf %156, %159 : vector<4x256xf32>
    %c1_i32_92 = arith.constant 1 : i32
    %161 = tpu.dynamic_rotate %121 by %c1_i32_92 dim 1 : vector<4x256xf32>, i32 -> vector<4x256xf32>
    %c255_i32_93 = arith.constant 255 : i32
    %162 = tpu.dynamic_rotate %121 by %c255_i32_93 dim 1 : vector<4x256xf32>, i32 -> vector<4x256xf32>
    %163 = vector.shape_cast %20 : vector<1x256xi1> to vector<1x256xi1>
    %164 = vector.broadcast %163 : vector<1x256xi1> to vector<4x256xi1>
    %165 = arith.select %164, %162, %161 : vector<4x256xi1>, vector<4x256xf32>
    %166 = vector.shape_cast %22 : vector<1x256xi1> to vector<1x256xi1>
    %167 = vector.broadcast %166 : vector<1x256xi1> to vector<4x256xi1>
    %168 = arith.select %167, %161, %162 : vector<4x256xi1>, vector<4x256xf32>
    %c1_94 = arith.constant 1 : index
    %c6_95 = arith.constant 6 : index
    %c0_96 = arith.constant 0 : index
    %c0_97 = arith.constant 0 : index
    %169 = vector.load %arg2[%c1_94, %c6_95, %c0_96, %c0_97] : memref<2x9x4x4xf32, #tpu.memory_space<vmem>>, vector<1x1x4x4xf32>
    %170 = vector.shape_cast %169 : vector<1x1x4x4xf32> to vector<4x4xf32>
    %cst_98 = arith.constant dense<0.000000e+00> : vector<4x256xf32>
    %171 = tpu.matmul %170, %165, %cst_98 {dimension_numbers = #tpu.dot_dimension_numbers<[1], [0], [0], [1], [0, 0, 1, 1], [], []>} : vector<4x4xf32>, vector<4x256xf32>, vector<4x256xf32> -> vector<4x256xf32>
    %172 = arith.addf %160, %171 : vector<4x256xf32>
    %c1_99 = arith.constant 1 : index
    %c7_100 = arith.constant 7 : index
    %c0_101 = arith.constant 0 : index
    %c0_102 = arith.constant 0 : index
    %173 = vector.load %arg2[%c1_99, %c7_100, %c0_101, %c0_102] : memref<2x9x4x4xf32, #tpu.memory_space<vmem>>, vector<1x1x4x4xf32>
    %174 = vector.shape_cast %173 : vector<1x1x4x4xf32> to vector<4x4xf32>
    %cst_103 = arith.constant dense<0.000000e+00> : vector<4x256xf32>
    %175 = tpu.matmul %174, %121, %cst_103 {dimension_numbers = #tpu.dot_dimension_numbers<[1], [0], [0], [1], [0, 0, 1, 1], [], []>} : vector<4x4xf32>, vector<4x256xf32>, vector<4x256xf32> -> vector<4x256xf32>
    %176 = arith.addf %172, %175 : vector<4x256xf32>
    %c1_104 = arith.constant 1 : index
    %c8_105 = arith.constant 8 : index
    %c0_106 = arith.constant 0 : index
    %c0_107 = arith.constant 0 : index
    %177 = vector.load %arg2[%c1_104, %c8_105, %c0_106, %c0_107] : memref<2x9x4x4xf32, #tpu.memory_space<vmem>>, vector<1x1x4x4xf32>
    %178 = vector.shape_cast %177 : vector<1x1x4x4xf32> to vector<4x4xf32>
    %cst_108 = arith.constant dense<0.000000e+00> : vector<4x256xf32>
    %179 = tpu.matmul %178, %168, %cst_108 {dimension_numbers = #tpu.dot_dimension_numbers<[1], [0], [0], [1], [0, 0, 1, 1], [], []>} : vector<4x4xf32>, vector<4x256xf32>, vector<4x256xf32> -> vector<4x256xf32>
    %180 = arith.addf %176, %179 : vector<4x256xf32>
    %cst_109 = arith.constant dense<0.000000e+00> : vector<4xf32>
    %181 = vector.multi_reduction <add>, %180, %cst_109 [1] : vector<4x256xf32> to vector<4xf32>
    %182 = vector.shape_cast %181 : vector<4xf32> to vector<4x1xf32>
    %cst_110 = arith.constant 2.560000e+02 : f32
    %183 = vector.broadcast %cst_110 : f32 to vector<4x1xf32>
    %184 = arith.divf %182, %183 : vector<4x1xf32>
    %185 = arith.mulf %180, %180 : vector<4x256xf32>
    %cst_111 = arith.constant dense<0.000000e+00> : vector<4xf32>
    %186 = vector.multi_reduction <add>, %185, %cst_111 [1] : vector<4x256xf32> to vector<4xf32>
    %187 = vector.shape_cast %186 : vector<4xf32> to vector<4x1xf32>
    %cst_112 = arith.constant 2.560000e+02 : f32
    %188 = vector.broadcast %cst_112 : f32 to vector<4x1xf32>
    %189 = arith.divf %187, %188 : vector<4x1xf32>
    %190 = arith.mulf %184, %184 : vector<4x1xf32>
    %191 = arith.subf %189, %190 : vector<4x1xf32>
    %192 = vector.broadcast %184 : vector<4x1xf32> to vector<4x256xf32>
    %193 = arith.subf %180, %192 : vector<4x256xf32>
    %cst_113 = arith.constant 9.99999974E-6 : f32
    %194 = vector.broadcast %cst_113 : f32 to vector<4x1xf32>
    %195 = arith.addf %191, %194 : vector<4x1xf32>
    %196 = math.rsqrt %195 : vector<4x1xf32>
    %197 = vector.broadcast %196 : vector<4x1xf32> to vector<4x256xf32>
    %198 = arith.mulf %193, %197 : vector<4x256xf32>
    %199 = arith.addf %1, %198 : vector<4x256xf32>
    %c0_114 = arith.constant 0 : index
    %c0_115 = arith.constant 0 : index
    %c0_116 = arith.constant 0 : index
    %200 = vector.load %arg3[%c0_114, %c0_115, %c0_116] : memref<1x4x256xf32, #tpu.memory_space<vmem>>, vector<1x4x256xf32>
    %201 = vector.shape_cast %200 : vector<1x4x256xf32> to vector<4x256xf32>
    %202 = vector.shape_cast %199 : vector<4x256xf32> to vector<1x4x256xf32>
    tpu.vector_store %arg3[%c0_114, %c0_115, %c0_116], %202 {strides = array<i32>} : memref<1x4x256xf32, #tpu.memory_space<vmem>>, vector<1x4x256xf32>,
    return
  }
  func.func @transform_0(%arg0: i32) -> (i32, i32, i32) {
    %c0_i32 = arith.constant 0 : i32
    %c0_i32_0 = arith.constant 0 : i32
    %c0_i32_1 = arith.constant 0 : i32
    return %arg0, %c0_i32, %c0_i32_0 : i32, i32, i32
  }
  func.func @transform_1(%arg0: i32) -> (i32, i32, i32, i32) {
    %c0_i32 = arith.constant 0 : i32
    %c0_i32_0 = arith.constant 0 : i32
    %c0_i32_1 = arith.constant 0 : i32
    %c0_i32_2 = arith.constant 0 : i32
    %c0_i32_3 = arith.constant 0 : i32
    return %c0_i32, %c0_i32_0, %c0_i32_1, %c0_i32_2 : i32, i32, i32, i32
  }
  func.func @transform_2(%arg0: i32) -> (i32, i32, i32) {
    %c0_i32 = arith.constant 0 : i32
    %c0_i32_0 = arith.constant 0 : i32
    %c0_i32_1 = arith.constant 0 : i32
    return %arg0, %c0_i32, %c0_i32_0 : i32, i32, i32
  }
}

</mosaic_0001>

<llo_original>
// kernel: tpu_custom_call.1
$region0: #{tpu_custom_call.1}
  #allocation0 [shape = 'u32[]', space=smem, size = 0x4, offset = 0x4, fixed_abs, tag = 'smem constant byte address 0x4 - core index']
  #allocation1 [shape = 'u32[72,128]{1,0:T(1,128)}', space=vmem, size = 0x9000, scoped, tag = 'internal scratch']
  %s0 = inlined_call_operand.vmem [shape: f32[2,4,256], index: 0, kind: input, shape index: {}]
  %s1 = inlined_call_operand.vmem [shape: f32[2,9,4,4], index: 1, kind: input, shape index: {}]
  %s2 = inlined_call_operand.hbm [shape: f32[2,4,256], index: 2, kind: output, shape index: {}]
  %s3 = sld [smem:[#allocation0]]
  $region41: #{tpu_custom_call.1} parent=0
    _
  %s5 = ssub.s32 1, %s3
  %s6 = scalar_select 0, %s5, %s3
  $region1: #{tpu_custom_call.1} parent=0
    #allocation2 [shape = 'u8[8192]{0}', space=vmem, size = 0x2000, scoped, tag = 'output window, operand 0']
    #allocation3 [shape = 's32[2]{0}', space=sflag, size = 0x8, scoped, tag = 'scoped memory for tpu_custom_call.1']
    %7 = vsyncpa [#allocation3], 0
    %s8 = scalar_lea.sflag [#allocation3], 1
    %9 = vsyncpa %s8, 0
    loop: start=0, step=1, limit=4
    $region2: #{tpu_custom_call.1} parent=1 // loop_pre_header
      _
    $region3: #{tpu_custom_call.1} parent=1 // loop_header
      %s11 = sphi 0, %s15
      %p12 = scmp.ge.s32.totalorder %s11, 4
      %s21 = sphi 0, %s23
      %s24 = sphi 0, %s21
      %s25 = sphi 0, %s24
      %s41 = sphi 0, %s25
      %s45 = sphi 0, %s45
      %s47 = sphi 0, %s45
      %s48 = sphi 0, %s47
      %s62 = sphi 0, %s48
      %s68 = sphi 0, %s70
      %s71 = sphi 0, %s68
      %s72 = sphi 0, %s71
      %s88 = sphi 0, %s72
    $region4: #{tpu_custom_call.1} parent=1 // loop_header_branch
      %14 = sbr.rel (%p12) target = $region8
    $region5: #{tpu_custom_call.1} parent=1 // loop_body
      %s16 = ssub.s32 %s11, 1
      %s17 = ssub.s32 %s11, 2
      %s18 = sadd.s32 %s11, 1
      %s19 = ssub.s32 %s11, %s18
      %p20 = scmp.eq.s32.totalorder %s19, 0
      %s22 = sadd.s32 %s21, 1
      %s23 = scalar_select %p20, %s21, %s22
      %p26 = pneg %p20
      %p27 = scmp.eq.s32.totalorder %s11, 1
      %p28 = por %p26, %p27
      %p29 = scmp.ne.s32.totalorder %s21, %s24
      %p30 = scmp.eq.s32.totalorder %s11, 0
      %p31 = por %p29, %p30
      %p32 = scmp.ne.s32.totalorder %s21, %s24
      %p33 = scmp.eq.s32.totalorder %s16, 1
      %p34 = por %p32, %p33
      %p35 = scmp.ne.s32.totalorder %s24, %s25
      %p36 = scmp.eq.s32.totalorder %s16, 0
      %p37 = por %p35, %p36
      %p38 = scmp.ne.s32.totalorder %s24, %s25
      %p39 = scmp.eq.s32.totalorder %s17, 1
      %p40 = por %p38, %p39
      %p42 = scmp.ne.s32.totalorder %s25, %s41
      %p43 = scmp.eq.s32.totalorder %s17, 0
      %p44 = por %p42, %p43
      %s46 = sadd.s32 %s45, 1
      %p49 = scmp.eq.s32.totalorder %s11, 1
      %p50 = scmp.ne.s32.totalorder %s45, %s47
      %p51 = scmp.eq.s32.totalorder %s11, 0
      %p52 = por %p50, %p51
      %p53 = scmp.ne.s32.totalorder %s45, %s47
      %p54 = scmp.eq.s32.totalorder %s16, 1
      %p55 = por %p53, %p54
      %p56 = scmp.ne.s32.totalorder %s47, %s48
      %p57 = scmp.eq.s32.totalorder %s16, 0
      %p58 = por %p56, %p57
      %p59 = scmp.ne.s32.totalorder %s47, %s48
      %p60 = scmp.eq.s32.totalorder %s17, 1
      %p61 = por %p59, %p60
      %p63 = scmp.ne.s32.totalorder %s48, %s62
      %p64 = scmp.eq.s32.totalorder %s17, 0
      %p65 = por %p63, %p64
      %s66 = ssub.s32 %s11, %s18
      %p67 = scmp.eq.s32.totalorder %s66, 0
      %s69 = sadd.s32 %s68, 1
      %s70 = scalar_select %p67, %s68, %s69
      %p73 = pneg %p67
      %p74 = scmp.eq.s32.totalorder %s11, 1
      %p75 = por %p73, %p74
      %p76 = scmp.ne.s32.totalorder %s68, %s71
      %p77 = scmp.eq.s32.totalorder %s11, 0
      %p78 = por %p76, %p77
      %p79 = scmp.ne.s32.totalorder %s68, %s71
      %p80 = scmp.eq.s32.totalorder %s16, 1
      %p81 = por %p79, %p80
      %p82 = scmp.ne.s32.totalorder %s71, %s72
      %p83 = scmp.eq.s32.totalorder %s16, 0
      %p84 = por %p82, %p83
      %p85 = scmp.ne.s32.totalorder %s71, %s72
      %p86 = scmp.eq.s32.totalorder %s17, 1
      %p87 = por %p85, %p86
      %p89 = scmp.ne.s32.totalorder %s72, %s88
      %p90 = scmp.eq.s32.totalorder %s17, 0
      %p91 = por %p89, %p90
      %p92 = scmp.le.s32.totalorder 1, %s11
      %p93 = scmp.lt.s32.totalorder %s11, 3
      %p94 = pnand %p92, %p93
      %p95 = pneg %p94
      // Predicated region
      $region9: #{tpu_custom_call.1} parent=5 // pred_check
        _
      $region10: #{tpu_custom_call.1} parent=5 // pred_check_branch
        %97 = sbr.rel (%p94) target = $region12
      $region11: #{tpu_custom_call.1} parent=5 // pred_region
        %s98 = ssub.s32 %s11, 1
        // Predicated region
        $region13: #{tpu_custom_call.1} parent=11 // pred_check
          %p99 = pneg %p58
        $region14: #{tpu_custom_call.1} parent=11 // pred_check_branch
          %101 = sbr.rel (%p99) target = $region16
        $region15: #{tpu_custom_call.1} parent=11 // pred_region
          _
        $region16: #{tpu_custom_call.1} parent=11 // pred_fallthru
          _
      $region12: #{tpu_custom_call.1} parent=5 // pred_fallthru
        _
      %p102 = scmp.lt.s32.totalorder %s11, 2
      // Predicated region
      $region17: #{tpu_custom_call.1} parent=5 // pred_check
        %p103 = pneg %p102
      $region18: #{tpu_custom_call.1} parent=5 // pred_check_branch
        %105 = sbr.rel (%p103) target = $region20
      $region19: #{tpu_custom_call.1} parent=5 // pred_region
        // Predicated region
        $region21: #{tpu_custom_call.1} parent=19 // pred_check
          %p106 = pneg %p31
        $region22: #{tpu_custom_call.1} parent=19 // pred_check_branch
          %108 = sbr.rel (%p106) target = $region24
        $region23: #{tpu_custom_call.1} parent=19 // pred_region
          %p109 = scmp.lt.s32.totalorder %s11, 1
          %s110 = scalar_select %p109, %s11, 1
          %s111 = smul.addr %s110, 2
          %s112 = smul.addr %s111, 4
          %s113 = scalar_lea.vmem %s0, %s112
        $region24: #{tpu_custom_call.1} parent=19 // pred_fallthru
          _
      $region20: #{tpu_custom_call.1} parent=5 // pred_fallthru
        _
      %p114 = scmp.le.s32.totalorder 1, %s11
      %p115 = scmp.lt.s32.totalorder %s11, 3
      %p116 = pnand %p114, %p115
      %p117 = pneg %p116
      // Predicated region
      $region25: #{tpu_custom_call.1} parent=5 // pred_check
        _
      $region26: #{tpu_custom_call.1} parent=5 // pred_check_branch
        %119 = sbr.rel (%p116) target = $region28
      $region27: #{tpu_custom_call.1} parent=5 // pred_region
        %s120 = ssub.s32 %s11, 1
        %p121 = scmp.lt.s32.totalorder %s16, 1
        %s122 = scalar_select %p121, %s16, 1
        %s123 = smul.addr %s122, 2
        %s124 = smul.addr %s123, 4
        %s125 = scalar_lea.vmem %s0, %s124
        %p126 = pneg %p37
        %p127 = pneg %p34
        %p128 = pneg %p58
        %p129 = pneg %p55
        %p130 = pneg %p84
        %p131 = pneg %p81
        %s132 = sand.u32 %s71, 1
        %s133 = scalar_lea.sflag [#allocation3], %s132
        %s134 = sand.u32 %s71, 1
        %s135 = smul.addr %s134, 8
        %s136 = scalar_lea.vmem [#allocation2], %s135
        %p137 = scmp.lt.s32.totalorder %s16, 1
        %s138 = scalar_select %p137, %s16, 1
        %s139 = smul.addr %s138, 2
        %s140 = smul.addr %s139, 4
        %s141 = scalar_lea.vmem %s0, %s140
        %v142 = vld [vmem:[%s141] sm:$0xff]
        %v143 = vlaneseq
        %v144 = vand.u32 %v143, 127
        %v145 = vadd.s32 %v144, 128
        %vm146 = vcmp.lt.s32.totalorder %v144, 0
        %v147 = vsub.s32 0, %v144
        %v148 = vsel %vm146, %v147, %v144
        %v149 = vshrl.u32 %v148, 4
        %v150 = vand.u32 %v148, 15
        %v151 = vsub.s32 0, %v150
        %v152 = vsel %vm146, %v151, %v150
        %vm153 = vcmp.lt.s32.totalorder %v145, 0
        %v154 = vsub.s32 0, %v145
        %v155 = vsel %vm153, %v154, %v145
        %v156 = vshrl.u32 %v155, 4
        %v157 = vand.u32 %v155, 15
        %v158 = vsub.s32 0, %v157
        %v159 = vsel %vm153, %v158, %v157
        %vm160 = vcmp.ne.s32.totalorder %v152, 0
        %vm161 = vcmp.ne.s32.totalorder %v159, 0
        %vm162 = vcmp.lt.s32.totalorder %v152, 0
        %vm163 = vcmp.lt.s32.totalorder %v159, 0
        %vm164 = vmand %vm162, %vm160
        %vm165 = vmand %vm163, %vm161
        %v166 = vadd.s32 %v152, 16
        %v167 = vadd.s32 %v159, 16
        %v168 = vsel %vm164, %v166, %v152
        %v169 = vsel %vm165, %v167, %v159
        %vm170 = vcmp.eq.s32.totalorder %v168, 0
        %vm171 = vcmp.eq.s32.totalorder %v169, 0
        %vm172 = vcmp.eq.s32.totalorder %v168, 15
        %vm173 = vcmp.eq.s32.totalorder %v169, 15
        %vm174 = vcmp.lt.s32.totalorder %v144, 16
        %vm175 = vcmp.lt.s32.totalorder %v145, 16
        %vm176 = vcmp.ge.s32.totalorder %v144, 240
        %vm177 = vcmp.ge.s32.totalorder %v145, 240
        %179 = vst [vmem:[#allocation1] ss:$2 sm:$0xff] %v142
        %v180 = vld.sshfl [vmem:[#allocation1] sm:$0xff pattern:$0x75316420]
        %v181 = vld.sshfl [vmem:[#allocation1 + $0x8] sm:$0xff pattern:$0x75316420]
        %184 = vrot.lane.b32.xlu0 %v180, 16
        %v185 = vpop.permute.xlu0 %184
        %186 = vrot.lane.b32.xlu0 %v181, 16
        %v187 = vpop.permute.xlu0 %186
        %v188 = vsel %vm174, %v185, %v187
        %v189 = vsel %vm174, %v187, %v185
        %190 = vst [vmem:[#allocation1] ss:$2 sm:$0xff] %v142
        %v191 = vld.sshfl [vmem:[#allocation1] sm:$0xff pattern:$0x75316420]
        %v192 = vld.sshfl [vmem:[#allocation1 + $0x8] sm:$0xff pattern:$0x75316420]
        %195 = vrot.lane.b32.xlu0 %v191, 112
        %v196 = vpop.permute.xlu0 %195
        %197 = vrot.lane.b32.xlu0 %v192, 112
        %v198 = vpop.permute.xlu0 %197
        %vm199 = vcmp.lt.s32.totalorder %v144, 112
        %v200 = vsel %vm199, %v196, %v198
        %v201 = vsel %vm199, %v198, %v196
        %v202 = vsel %vm174, 1, 0
        %v203 = vsel %vm175, 1, 0
        %vm204 = vcmp.eq.s32.totalorder %v202, 1
        %vm205 = vcmp.eq.s32.totalorder %v203, 1
        %v206 = vsel %vm204, %v200, %v189
        %v207 = vsel %vm205, %v201, %v188
        %v208 = vsel %vm176, 1, 0
        %v209 = vsel %vm177, 1, 0
        %vm210 = vcmp.eq.s32.totalorder %v208, 1
        %vm211 = vcmp.eq.s32.totalorder %v209, 1
        %v212 = vsel %vm210, %v189, %v200
        %v213 = vsel %vm211, %v188, %v201
        %214 = vrot.lane.b32.xlu0 %v206, 1
        %v215 = vpop.permute.xlu0 %214
        %216 = vrot.lane.b32.xlu0 %v207, 1
        %v217 = vpop.permute.xlu0 %216
        %vm218 = vcmp.lt.s32.totalorder %v144, 1
        %v219 = vsel %vm218, %v215, %v217
        %v220 = vsel %vm218, %v217, %v215
        %221 = vrot.lane.b32.xlu0 %v206, 127
        %v222 = vpop.permute.xlu0 %221
        %223 = vrot.lane.b32.xlu0 %v207, 127
        %v224 = vpop.permute.xlu0 %223
        %vm225 = vcmp.lt.s32.totalorder %v144, 127
        %v226 = vsel %vm225, %v222, %v224
        %v227 = vsel %vm225, %v224, %v222
        %v228 = vsel %vm170, 1, 0
        %v229 = vsel %vm171, 1, 0
        %vm230 = vcmp.eq.s32.totalorder %v228, 1
        %vm231 = vcmp.eq.s32.totalorder %v229, 1
        %v232 = vsel %vm230, %v226, %v220
        %v233 = vsel %vm231, %v227, %v219
        %v234 = vsel %vm172, 1, 0
        %v235 = vsel %vm173, 1, 0
        %vm236 = vcmp.eq.s32.totalorder %v234, 1
        %vm237 = vcmp.eq.s32.totalorder %v235, 1
        %v238 = vsel %vm236, %v220, %v226
        %v239 = vsel %vm237, %v219, %v227
        %v240 = vld [vmem:[%s1] sm:$0xf]
        %s241 = scalar_lea.vmem %s1, 4
        %v242 = vld [vmem:[%s241] sm:$0xf]
        %vm243 = vcmask 31744
        %v245 = vsel %vm243, %v242, 0
        %vm247 = vcmask 1043456
        %v249 = vsel %vm247, %v206, 0
        %v252 = vsel %vm247, %v207, 0
        %254 = vmatpush.msra.mxu0 0.0
        %255 = vmatpush.msra.mxu0 0.0
        %256 = vmatpush.msra.mxu0 0.0
        %257 = vmatpush.msra.mxu0 0.0
        %258 = vmatpush.msra.mxu0 0.0
        %259 = vmatpush.msra.mxu0 0.0
        %260 = vmatpush.msra.mxu0 0.0
        %261 = vmatpush.msra.mxu0 0.0
        %262 = vmatpush.msra.mxu0 0.0
        %263 = vmatpush.msra.mxu0 0.0
        %264 = vmatpush.msra.mxu0 0.0
        %265 = vmatpush.msra.mxu0 0.0
        %266 = vmatpush.msra.mxu0 0.0
        %267 = vmatpush.msra.mxu0 0.0
        %268 = vmatpush.msra.mxu0 0.0
        %269 = vmatpush.msra.mxu0 %v249
        %270 = vmatmul.f32.gmra.mxu0 %v245
        %v271 = vpop.f32.mrf.mxu0
        %v272 = vadd.f32 0.0, %v271
        %273 = vdwg.mxu0
        %274 = vmatpush.msra.mxu0 0.0
        %275 = vmatpush.msra.mxu0 0.0
        %276 = vmatpush.msra.mxu0 0.0
        %277 = vmatpush.msra.mxu0 0.0
        %278 = vmatpush.msra.mxu0 0.0
        %279 = vmatpush.msra.mxu0 0.0
        %280 = vmatpush.msra.mxu0 0.0
        %281 = vmatpush.msra.mxu0 0.0
        %282 = vmatpush.msra.mxu0 0.0
        %283 = vmatpush.msra.mxu0 0.0
        %284 = vmatpush.msra.mxu0 0.0
        %285 = vmatpush.msra.mxu0 0.0
        %286 = vmatpush.msra.mxu0 0.0
        %287 = vmatpush.msra.mxu0 0.0
        %288 = vmatpush.msra.mxu0 0.0
        %289 = vmatpush.msra.mxu0 %v252
        %290 = vmatmul.f32.gmra.mxu0 %v245
        %v291 = vpop.f32.mrf.mxu0
        %v292 = vadd.f32 0.0, %v291
        %293 = vdwg.mxu0
        %v295 = vsel %vm243, %v240, 0
        %v298 = vsel %vm247, %v232, 0
        %v301 = vsel %vm247, %v233, 0
        %303 = vmatpush.msra.mxu0 0.0
        %304 = vmatpush.msra.mxu0 0.0
        %305 = vmatpush.msra.mxu0 0.0
        %306 = vmatpush.msra.mxu0 0.0
        %307 = vmatpush.msra.mxu0 0.0
        %308 = vmatpush.msra.mxu0 0.0
        %309 = vmatpush.msra.mxu0 0.0
        %310 = vmatpush.msra.mxu0 0.0
        %311 = vmatpush.msra.mxu0 0.0
        %312 = vmatpush.msra.mxu0 0.0
        %313 = vmatpush.msra.mxu0 0.0
        %314 = vmatpush.msra.mxu0 0.0
        %315 = vmatpush.msra.mxu0 0.0
        %316 = vmatpush.msra.mxu0 0.0
        %317 = vmatpush.msra.mxu0 0.0
        %318 = vmatpush.msra.mxu0 %v298
        %319 = vmatmul.f32.gmra.mxu0 %v295
        %v320 = vpop.f32.mrf.mxu0
        %v321 = vadd.f32 %v272, %v320
        %322 = vdwg.mxu0
        %323 = vmatpush.msra.mxu0 0.0
        %324 = vmatpush.msra.mxu0 0.0
        %325 = vmatpush.msra.mxu0 0.0
        %326 = vmatpush.msra.mxu0 0.0
        %327 = vmatpush.msra.mxu0 0.0
        %328 = vmatpush.msra.mxu0 0.0
        %329 = vmatpush.msra.mxu0 0.0
        %330 = vmatpush.msra.mxu0 0.0
        %331 = vmatpush.msra.mxu0 0.0
        %332 = vmatpush.msra.mxu0 0.0
        %333 = vmatpush.msra.mxu0 0.0
        %334 = vmatpush.msra.mxu0 0.0
        %335 = vmatpush.msra.mxu0 0.0
        %336 = vmatpush.msra.mxu0 0.0
        %337 = vmatpush.msra.mxu0 0.0
        %338 = vmatpush.msra.mxu0 %v301
        %339 = vmatmul.f32.gmra.mxu0 %v295
        %v340 = vpop.f32.mrf.mxu0
        %v341 = vadd.f32 %v292, %v340
        %342 = vdwg.mxu0
        %s343 = scalar_lea.vmem %s1, 8
        %v344 = vld [vmem:[%s343] sm:$0xf]
        %v346 = vsel %vm243, %v344, 0
        %v349 = vsel %vm247, %v238, 0
        %v352 = vsel %vm247, %v239, 0
        %354 = vmatpush.msra.mxu0 0.0
        %355 = vmatpush.msra.mxu0 0.0
        %356 = vmatpush.msra.mxu0 0.0
        %357 = vmatpush.msra.mxu0 0.0
        %358 = vmatpush.msra.mxu0 0.0
        %359 = vmatpush.msra.mxu0 0.0
        %360 = vmatpush.msra.mxu0 0.0
        %361 = vmatpush.msra.mxu0 0.0
        %362 = vmatpush.msra.mxu0 0.0
        %363 = vmatpush.msra.mxu0 0.0
        %364 = vmatpush.msra.mxu0 0.0
        %365 = vmatpush.msra.mxu0 0.0
        %366 = vmatpush.msra.mxu0 0.0
        %367 = vmatpush.msra.mxu0 0.0
        %368 = vmatpush.msra.mxu0 0.0
        %369 = vmatpush.msra.mxu0 %v349
        %370 = vmatmul.f32.gmra.mxu0 %v346
        %v371 = vpop.f32.mrf.mxu0
        %v372 = vadd.f32 0.0, %v371
        %373 = vdwg.mxu0
        %374 = vmatpush.msra.mxu0 0.0
        %375 = vmatpush.msra.mxu0 0.0
        %376 = vmatpush.msra.mxu0 0.0
        %377 = vmatpush.msra.mxu0 0.0
        %378 = vmatpush.msra.mxu0 0.0
        %379 = vmatpush.msra.mxu0 0.0
        %380 = vmatpush.msra.mxu0 0.0
        %381 = vmatpush.msra.mxu0 0.0
        %382 = vmatpush.msra.mxu0 0.0
        %383 = vmatpush.msra.mxu0 0.0
        %384 = vmatpush.msra.mxu0 0.0
        %385 = vmatpush.msra.mxu0 0.0
        %386 = vmatpush.msra.mxu0 0.0
        %387 = vmatpush.msra.mxu0 0.0
        %388 = vmatpush.msra.mxu0 0.0
        %389 = vmatpush.msra.mxu0 %v352
        %390 = vmatmul.f32.gmra.mxu0 %v346
        %v391 = vpop.f32.mrf.mxu0
        %v392 = vadd.f32 0.0, %v391
        %393 = vdwg.mxu0
        %v394 = vadd.f32 %v321, %v372
        %v395 = vadd.f32 %v341, %v392
        %396 = vst [vmem:[#allocation1] ss:$2 sm:$0xff] %v142
        %v397 = vld.sshfl [vmem:[#allocation1] sm:$0xff pattern:$0x75316420]
        %v398 = vld.sshfl [vmem:[#allocation1 + $0x8] sm:$0xff pattern:$0x75316420]
        %401 = vrot.lane.b32.xlu0 %v397, 1
        %v402 = vpop.permute.xlu0 %401
        %403 = vrot.lane.b32.xlu0 %v398, 1
        %v404 = vpop.permute.xlu0 %403
        %v405 = vsel %vm218, %v402, %v404
        %v406 = vsel %vm218, %v404, %v402
        %407 = vst [vmem:[#allocation1] ss:$2 sm:$0xff] %v142
        %v408 = vld.sshfl [vmem:[#allocation1] sm:$0xff pattern:$0x75316420]
        %v409 = vld.sshfl [vmem:[#allocation1 + $0x8] sm:$0xff pattern:$0x75316420]
        %412 = vrot.lane.b32.xlu0 %v408, 127
        %v413 = vpop.permute.xlu0 %412
        %414 = vrot.lane.b32.xlu0 %v409, 127
        %v415 = vpop.permute.xlu0 %414
        %v416 = vsel %vm225, %v413, %v415
        %v417 = vsel %vm225, %v415, %v413
        %v418 = vsel %vm230, %v416, %v406
        %v419 = vsel %vm231, %v417, %v405
        %v420 = vsel %vm236, %v406, %v416
        %v421 = vsel %vm237, %v405, %v417
        %s422 = scalar_lea.vmem %s1, 12
        %v423 = vld [vmem:[%s422] sm:$0xf]
        %v425 = vsel %vm243, %v423, 0
        %v428 = vsel %vm247, %v418, 0
        %v431 = vsel %vm247, %v419, 0
        %433 = vmatpush.msra.mxu0 0.0
        %434 = vmatpush.msra.mxu0 0.0
        %435 = vmatpush.msra.mxu0 0.0
        %436 = vmatpush.msra.mxu0 0.0
        %437 = vmatpush.msra.mxu0 0.0
        %438 = vmatpush.msra.mxu0 0.0
        %439 = vmatpush.msra.mxu0 0.0
        %440 = vmatpush.msra.mxu0 0.0
        %441 = vmatpush.msra.mxu0 0.0
        %442 = vmatpush.msra.mxu0 0.0
        %443 = vmatpush.msra.mxu0 0.0
        %444 = vmatpush.msra.mxu0 0.0
        %445 = vmatpush.msra.mxu0 0.0
        %446 = vmatpush.msra.mxu0 0.0
        %447 = vmatpush.msra.mxu0 0.0
        %448 = vmatpush.msra.mxu0 %v428
        %449 = vmatmul.f32.gmra.mxu0 %v425
        %v450 = vpop.f32.mrf.mxu0
        %v451 = vadd.f32 0.0, %v450
        %452 = vdwg.mxu0
        %453 = vmatpush.msra.mxu0 0.0
        %454 = vmatpush.msra.mxu0 0.0
        %455 = vmatpush.msra.mxu0 0.0
        %456 = vmatpush.msra.mxu0 0.0
        %457 = vmatpush.msra.mxu0 0.0
        %458 = vmatpush.msra.mxu0 0.0
        %459 = vmatpush.msra.mxu0 0.0
        %460 = vmatpush.msra.mxu0 0.0
        %461 = vmatpush.msra.mxu0 0.0
        %462 = vmatpush.msra.mxu0 0.0
        %463 = vmatpush.msra.mxu0 0.0
        %464 = vmatpush.msra.mxu0 0.0
        %465 = vmatpush.msra.mxu0 0.0
        %466 = vmatpush.msra.mxu0 0.0
        %467 = vmatpush.msra.mxu0 0.0
        %468 = vmatpush.msra.mxu0 %v431
        %469 = vmatmul.f32.gmra.mxu0 %v425
        %v470 = vpop.f32.mrf.mxu0
        %v471 = vadd.f32 0.0, %v470
        %472 = vdwg.mxu0
        %v473 = vadd.f32 %v394, %v451
        %v474 = vadd.f32 %v395, %v471
        %s475 = scalar_lea.vmem %s1, 16
        %v476 = vld [vmem:[%s475] sm:$0xf]
        %477 = vst [vmem:[#allocation1] ss:$2 sm:$0xff] %v142
        %v478 = vld.sshfl [vmem:[#allocation1] sm:$0xff pattern:$0x75316420]
        %v479 = vld.sshfl [vmem:[#allocation1 + $0x8] sm:$0xff pattern:$0x75316420]
        %v481 = vsel %vm243, %v476, 0
        %v483 = vsel %vm247, %v478, 0
        %v485 = vsel %vm247, %v479, 0
        %487 = vmatpush.msra.mxu0 0.0
        %488 = vmatpush.msra.mxu0 0.0
        %489 = vmatpush.msra.mxu0 0.0
        %490 = vmatpush.msra.mxu0 0.0
        %491 = vmatpush.msra.mxu0 0.0
        %492 = vmatpush.msra.mxu0 0.0
        %493 = vmatpush.msra.mxu0 0.0
        %494 = vmatpush.msra.mxu0 0.0
        %495 = vmatpush.msra.mxu0 0.0
        %496 = vmatpush.msra.mxu0 0.0
        %497 = vmatpush.msra.mxu0 0.0
        %498 = vmatpush.msra.mxu0 0.0
        %499 = vmatpush.msra.mxu0 0.0
        %500 = vmatpush.msra.mxu0 0.0
        %501 = vmatpush.msra.mxu0 0.0
        %502 = vmatpush.msra.mxu0 %v483
        %503 = vmatmul.f32.gmra.mxu0 %v481
        %v504 = vpop.f32.mrf.mxu0
        %v505 = vadd.f32 0.0, %v504
        %506 = vdwg.mxu0
        %507 = vmatpush.msra.mxu0 0.0
        %508 = vmatpush.msra.mxu0 0.0
        %509 = vmatpush.msra.mxu0 0.0
        %510 = vmatpush.msra.mxu0 0.0
        %511 = vmatpush.msra.mxu0 0.0
        %512 = vmatpush.msra.mxu0 0.0
        %513 = vmatpush.msra.mxu0 0.0
        %514 = vmatpush.msra.mxu0 0.0
        %515 = vmatpush.msra.mxu0 0.0
        %516 = vmatpush.msra.mxu0 0.0
        %517 = vmatpush.msra.mxu0 0.0
        %518 = vmatpush.msra.mxu0 0.0
        %519 = vmatpush.msra.mxu0 0.0
        %520 = vmatpush.msra.mxu0 0.0
        %521 = vmatpush.msra.mxu0 0.0
        %522 = vmatpush.msra.mxu0 %v485
        %523 = vmatmul.f32.gmra.mxu0 %v481
        %v524 = vpop.f32.mrf.mxu0
        %v525 = vadd.f32 0.0, %v524
        %526 = vdwg.mxu0
        %v527 = vadd.f32 %v473, %v505
        %v528 = vadd.f32 %v474, %v525
        %s529 = scalar_lea.vmem %s1, 20
        %v530 = vld [vmem:[%s529] sm:$0xf]
        %v532 = vsel %vm243, %v530, 0
        %v535 = vsel %vm247, %v420, 0
        %v538 = vsel %vm247, %v421, 0
        %540 = vmatpush.msra.mxu0 0.0
        %541 = vmatpush.msra.mxu0 0.0
        %542 = vmatpush.msra.mxu0 0.0
        %543 = vmatpush.msra.mxu0 0.0
        %544 = vmatpush.msra.mxu0 0.0
        %545 = vmatpush.msra.mxu0 0.0
        %546 = vmatpush.msra.mxu0 0.0
        %547 = vmatpush.msra.mxu0 0.0
        %548 = vmatpush.msra.mxu0 0.0
        %549 = vmatpush.msra.mxu0 0.0
        %550 = vmatpush.msra.mxu0 0.0
        %551 = vmatpush.msra.mxu0 0.0
        %552 = vmatpush.msra.mxu0 0.0
        %553 = vmatpush.msra.mxu0 0.0
        %554 = vmatpush.msra.mxu0 0.0
        %555 = vmatpush.msra.mxu0 %v535
        %556 = vmatmul.f32.gmra.mxu0 %v532
        %v557 = vpop.f32.mrf.mxu0
        %v558 = vadd.f32 0.0, %v557
        %559 = vdwg.mxu0
        %560 = vmatpush.msra.mxu0 0.0
        %561 = vmatpush.msra.mxu0 0.0
        %562 = vmatpush.msra.mxu0 0.0
        %563 = vmatpush.msra.mxu0 0.0
        %564 = vmatpush.msra.mxu0 0.0
        %565 = vmatpush.msra.mxu0 0.0
        %566 = vmatpush.msra.mxu0 0.0
        %567 = vmatpush.msra.mxu0 0.0
        %568 = vmatpush.msra.mxu0 0.0
        %569 = vmatpush.msra.mxu0 0.0
        %570 = vmatpush.msra.mxu0 0.0
        %571 = vmatpush.msra.mxu0 0.0
        %572 = vmatpush.msra.mxu0 0.0
        %573 = vmatpush.msra.mxu0 0.0
        %574 = vmatpush.msra.mxu0 0.0
        %575 = vmatpush.msra.mxu0 %v538
        %576 = vmatmul.f32.gmra.mxu0 %v532
        %v577 = vpop.f32.mrf.mxu0
        %v578 = vadd.f32 0.0, %v577
        %579 = vdwg.mxu0
        %v580 = vadd.f32 %v527, %v558
        %v581 = vadd.f32 %v528, %v578
        %582 = vrot.lane.b32.xlu0 %v212, 1
        %v583 = vpop.permute.xlu0 %582
        %584 = vrot.lane.b32.xlu0 %v213, 1
        %v585 = vpop.permute.xlu0 %584
        %v586 = vsel %vm218, %v583, %v585
        %v587 = vsel %vm218, %v585, %v583
        %588 = vrot.lane.b32.xlu0 %v212, 127
        %v589 = vpop.permute.xlu0 %588
        %590 = vrot.lane.b32.xlu0 %v213, 127
        %v591 = vpop.permute.xlu0 %590
        %v592 = vsel %vm225, %v589, %v591
        %v593 = vsel %vm225, %v591, %v589
        %v594 = vsel %vm230, %v592, %v587
        %v595 = vsel %vm231, %v593, %v586
        %v596 = vsel %vm236, %v587, %v592
        %v597 = vsel %vm237, %v586, %v593
        %s598 = scalar_lea.vmem %s1, 24
        %v599 = vld [vmem:[%s598] sm:$0xf]
        %v601 = vsel %vm243, %v599, 0
        %v604 = vsel %vm247, %v594, 0
        %v607 = vsel %vm247, %v595, 0
        %609 = vmatpush.msra.mxu0 0.0
        %610 = vmatpush.msra.mxu0 0.0
        %611 = vmatpush.msra.mxu0 0.0
        %612 = vmatpush.msra.mxu0 0.0
        %613 = vmatpush.msra.mxu0 0.0
        %614 = vmatpush.msra.mxu0 0.0
        %615 = vmatpush.msra.mxu0 0.0
        %616 = vmatpush.msra.mxu0 0.0
        %617 = vmatpush.msra.mxu0 0.0
        %618 = vmatpush.msra.mxu0 0.0
        %619 = vmatpush.msra.mxu0 0.0
        %620 = vmatpush.msra.mxu0 0.0
        %621 = vmatpush.msra.mxu0 0.0
        %622 = vmatpush.msra.mxu0 0.0
        %623 = vmatpush.msra.mxu0 0.0
        %624 = vmatpush.msra.mxu0 %v604
        %625 = vmatmul.f32.gmra.mxu0 %v601
        %v626 = vpop.f32.mrf.mxu0
        %v627 = vadd.f32 0.0, %v626
        %628 = vdwg.mxu0
        %629 = vmatpush.msra.mxu0 0.0
        %630 = vmatpush.msra.mxu0 0.0
        %631 = vmatpush.msra.mxu0 0.0
        %632 = vmatpush.msra.mxu0 0.0
        %633 = vmatpush.msra.mxu0 0.0
        %634 = vmatpush.msra.mxu0 0.0
        %635 = vmatpush.msra.mxu0 0.0
        %636 = vmatpush.msra.mxu0 0.0
        %637 = vmatpush.msra.mxu0 0.0
        %638 = vmatpush.msra.mxu0 0.0
        %639 = vmatpush.msra.mxu0 0.0
        %640 = vmatpush.msra.mxu0 0.0
        %641 = vmatpush.msra.mxu0 0.0
        %642 = vmatpush.msra.mxu0 0.0
        %643 = vmatpush.msra.mxu0 0.0
        %644 = vmatpush.msra.mxu0 %v607
        %645 = vmatmul.f32.gmra.mxu0 %v601
        %v646 = vpop.f32.mrf.mxu0
        %v647 = vadd.f32 0.0, %v646
        %648 = vdwg.mxu0
        %v649 = vadd.f32 %v580, %v627
        %v650 = vadd.f32 %v581, %v647
        %s651 = scalar_lea.vmem %s1, 28
        %v652 = vld [vmem:[%s651] sm:$0xf]
        %v654 = vsel %vm243, %v652, 0
        %v657 = vsel %vm247, %v212, 0
        %v660 = vsel %vm247, %v213, 0
        %662 = vmatpush.msra.mxu0 0.0
        %663 = vmatpush.msra.mxu0 0.0
        %664 = vmatpush.msra.mxu0 0.0
        %665 = vmatpush.msra.mxu0 0.0
        %666 = vmatpush.msra.mxu0 0.0
        %667 = vmatpush.msra.mxu0 0.0
        %668 = vmatpush.msra.mxu0 0.0
        %669 = vmatpush.msra.mxu0 0.0
        %670 = vmatpush.msra.mxu0 0.0
        %671 = vmatpush.msra.mxu0 0.0
        %672 = vmatpush.msra.mxu0 0.0
        %673 = vmatpush.msra.mxu0 0.0
        %674 = vmatpush.msra.mxu0 0.0
        %675 = vmatpush.msra.mxu0 0.0
        %676 = vmatpush.msra.mxu0 0.0
        %677 = vmatpush.msra.mxu0 %v657
        %678 = vmatmul.f32.gmra.mxu0 %v654
        %v679 = vpop.f32.mrf.mxu0
        %v680 = vadd.f32 0.0, %v679
        %681 = vdwg.mxu0
        %682 = vmatpush.msra.mxu0 0.0
        %683 = vmatpush.msra.mxu0 0.0
        %684 = vmatpush.msra.mxu0 0.0
        %685 = vmatpush.msra.mxu0 0.0
        %686 = vmatpush.msra.mxu0 0.0
        %687 = vmatpush.msra.mxu0 0.0
        %688 = vmatpush.msra.mxu0 0.0
        %689 = vmatpush.msra.mxu0 0.0
        %690 = vmatpush.msra.mxu0 0.0
        %691 = vmatpush.msra.mxu0 0.0
        %692 = vmatpush.msra.mxu0 0.0
        %693 = vmatpush.msra.mxu0 0.0
        %694 = vmatpush.msra.mxu0 0.0
        %695 = vmatpush.msra.mxu0 0.0
        %696 = vmatpush.msra.mxu0 0.0
        %697 = vmatpush.msra.mxu0 %v660
        %698 = vmatmul.f32.gmra.mxu0 %v654
        %v699 = vpop.f32.mrf.mxu0
        %v700 = vadd.f32 0.0, %v699
        %701 = vdwg.mxu0
        %v702 = vadd.f32 %v649, %v680
        %v703 = vadd.f32 %v650, %v700
        %s704 = scalar_lea.vmem %s1, 32
        %v705 = vld [vmem:[%s704] sm:$0xf]
        %v707 = vsel %vm243, %v705, 0
        %v710 = vsel %vm247, %v596, 0
        %v713 = vsel %vm247, %v597, 0
        %715 = vmatpush.msra.mxu0 0.0
        %716 = vmatpush.msra.mxu0 0.0
        %717 = vmatpush.msra.mxu0 0.0
        %718 = vmatpush.msra.mxu0 0.0
        %719 = vmatpush.msra.mxu0 0.0
        %720 = vmatpush.msra.mxu0 0.0
        %721 = vmatpush.msra.mxu0 0.0
        %722 = vmatpush.msra.mxu0 0.0
        %723 = vmatpush.msra.mxu0 0.0
        %724 = vmatpush.msra.mxu0 0.0
        %725 = vmatpush.msra.mxu0 0.0
        %726 = vmatpush.msra.mxu0 0.0
        %727 = vmatpush.msra.mxu0 0.0
        %728 = vmatpush.msra.mxu0 0.0
        %729 = vmatpush.msra.mxu0 0.0
        %730 = vmatpush.msra.mxu0 %v710
        %731 = vmatmul.f32.gmra.mxu0 %v707
        %v732 = vpop.f32.mrf.mxu0
        %v733 = vadd.f32 0.0, %v732
        %734 = vdwg.mxu0
        %735 = vmatpush.msra.mxu0 0.0
        %736 = vmatpush.msra.mxu0 0.0
        %737 = vmatpush.msra.mxu0 0.0
        %738 = vmatpush.msra.mxu0 0.0
        %739 = vmatpush.msra.mxu0 0.0
        %740 = vmatpush.msra.mxu0 0.0
        %741 = vmatpush.msra.mxu0 0.0
        %742 = vmatpush.msra.mxu0 0.0
        %743 = vmatpush.msra.mxu0 0.0
        %744 = vmatpush.msra.mxu0 0.0
        %745 = vmatpush.msra.mxu0 0.0
        %746 = vmatpush.msra.mxu0 0.0
        %747 = vmatpush.msra.mxu0 0.0
        %748 = vmatpush.msra.mxu0 0.0
        %749 = vmatpush.msra.mxu0 0.0
        %750 = vmatpush.msra.mxu0 %v713
        %751 = vmatmul.f32.gmra.mxu0 %v707
        %v752 = vpop.f32.mrf.mxu0
        %v753 = vadd.f32 0.0, %v752
        %754 = vdwg.mxu0
        %v755 = vadd.f32 %v702, %v733
        %v756 = vadd.f32 %v703, %v753
        %v757 = vsel %vm247, %v755, 0.0
        %v758 = vsel %vm247, %v756, 0.0
        %v759 = vadd.f32 %v757, %v758
        %760 = vadd.xlane.f32.xlu0 %v759
        %v761 = vpop.xlane.xlu0 %760
        %v762 = vrcp.pop 256.0
        %v763 = vmul.f32 256.0, %v762
        %v764 = vsub.f32 1.0, %v763
        %v765 = vmul.f32 %v762, %v764
        %v766 = vadd.f32 %v762, %v765
        %vm767 = vweird.f32 %v762
        %v768 = vsel %vm767, %v762, %v766
        %v769 = vmul.f32 %v761, %v768
        %v770 = vmul.f32 %v755, %v755
        %v771 = vmul.f32 %v756, %v756
        %v772 = vsel %vm247, %v770, 0.0
        %v773 = vsel %vm247, %v771, 0.0
        %v774 = vadd.f32 %v772, %v773
        %775 = vadd.xlane.f32.xlu0 %v774
        %v776 = vpop.xlane.xlu0 %775
        %v777 = vmul.f32 %v776, %v768
        %v778 = vmul.f32 %v769, %v769
        %v779 = vsub.f32 %v777, %v778
        %v780 = vsub.f32 %v755, %v769
        %v781 = vsub.f32 %v756, %v769
        %v782 = vadd.f32 %v779, 1e-05
        %v783 = vrsqrt.pop %v782
        %v784 = vmul.f32 %v783, %v782
        %v785 = vmul.f32 %v784, %v783
        %v786 = vmul.f32 0.5, %v785
        %v787 = vsub.f32 1.5, %v786
        %v788 = vmul.f32 %v783, %v787
        %vm789 = vweird.f32 %v782
        %vm790 = vweird.f32 %v783
        %vm791 = vmor %vm789, %vm790
        %v792 = vsel %vm791, %v783, %v788
        %v793 = vmul.f32 %v780, %v792
        %v794 = vmul.f32 %v781, %v792
        %v795 = vmax.f32 %v793, 0.0
        %v796 = vmax.f32 %v794, 0.0
        %797 = vrot.lane.b32.xlu0 %v795, 16
        %v798 = vpop.permute.xlu0 %797
        %799 = vrot.lane.b32.xlu0 %v796, 16
        %v800 = vpop.permute.xlu0 %799
        %v801 = vsel %vm174, %v798, %v800
        %v802 = vsel %vm174, %v800, %v798
        %803 = vrot.lane.b32.xlu0 %v795, 112
        %v804 = vpop.permute.xlu0 %803
        %805 = vrot.lane.b32.xlu0 %v796, 112
        %v806 = vpop.permute.xlu0 %805
        %v807 = vsel %vm199, %v804, %v806
        %v808 = vsel %vm199, %v806, %v804
        %v809 = vsel %vm204, %v807, %v802
        %v810 = vsel %vm205, %v808, %v801
        %v811 = vsel %vm210, %v802, %v807
        %v812 = vsel %vm211, %v801, %v808
        %813 = vrot.lane.b32.xlu0 %v809, 1
        %v814 = vpop.permute.xlu0 %813
        %815 = vrot.lane.b32.xlu0 %v810, 1
        %v816 = vpop.permute.xlu0 %815
        %v817 = vsel %vm218, %v814, %v816
        %v818 = vsel %vm218, %v816, %v814
        %819 = vrot.lane.b32.xlu0 %v809, 127
        %v820 = vpop.permute.xlu0 %819
        %821 = vrot.lane.b32.xlu0 %v810, 127
        %v822 = vpop.permute.xlu0 %821
        %v823 = vsel %vm225, %v820, %v822
        %v824 = vsel %vm225, %v822, %v820
        %v825 = vsel %vm230, %v823, %v818
        %v826 = vsel %vm231, %v824, %v817
        %v827 = vsel %vm236, %v818, %v823
        %v828 = vsel %vm237, %v817, %v824
        %s829 = scalar_lea.vmem %s1, 36
        %v830 = vld [vmem:[%s829] sm:$0xf]
        %s831 = scalar_lea.vmem %s1, 40
        %v832 = vld [vmem:[%s831] sm:$0xf]
        %v834 = vsel %vm243, %v832, 0
        %v837 = vsel %vm247, %v809, 0
        %v840 = vsel %vm247, %v810, 0
        %842 = vmatpush.msra.mxu0 0.0
        %843 = vmatpush.msra.mxu0 0.0
        %844 = vmatpush.msra.mxu0 0.0
        %845 = vmatpush.msra.mxu0 0.0
        %846 = vmatpush.msra.mxu0 0.0
        %847 = vmatpush.msra.mxu0 0.0
        %848 = vmatpush.msra.mxu0 0.0
        %849 = vmatpush.msra.mxu0 0.0
        %850 = vmatpush.msra.mxu0 0.0
        %851 = vmatpush.msra.mxu0 0.0
        %852 = vmatpush.msra.mxu0 0.0
        %853 = vmatpush.msra.mxu0 0.0
        %854 = vmatpush.msra.mxu0 0.0
        %855 = vmatpush.msra.mxu0 0.0
        %856 = vmatpush.msra.mxu0 0.0
        %857 = vmatpush.msra.mxu0 %v837
        %858 = vmatmul.f32.gmra.mxu0 %v834
        %v859 = vpop.f32.mrf.mxu0
        %v860 = vadd.f32 0.0, %v859
        %861 = vdwg.mxu0
        %862 = vmatpush.msra.mxu0 0.0
        %863 = vmatpush.msra.mxu0 0.0
        %864 = vmatpush.msra.mxu0 0.0
        %865 = vmatpush.msra.mxu0 0.0
        %866 = vmatpush.msra.mxu0 0.0
        %867 = vmatpush.msra.mxu0 0.0
        %868 = vmatpush.msra.mxu0 0.0
        %869 = vmatpush.msra.mxu0 0.0
        %870 = vmatpush.msra.mxu0 0.0
        %871 = vmatpush.msra.mxu0 0.0
        %872 = vmatpush.msra.mxu0 0.0
        %873 = vmatpush.msra.mxu0 0.0
        %874 = vmatpush.msra.mxu0 0.0
        %875 = vmatpush.msra.mxu0 0.0
        %876 = vmatpush.msra.mxu0 0.0
        %877 = vmatpush.msra.mxu0 %v840
        %878 = vmatmul.f32.gmra.mxu0 %v834
        %v879 = vpop.f32.mrf.mxu0
        %v880 = vadd.f32 0.0, %v879
        %881 = vdwg.mxu0
        %v883 = vsel %vm243, %v830, 0
        %v886 = vsel %vm247, %v825, 0
        %v889 = vsel %vm247, %v826, 0
        %891 = vmatpush.msra.mxu0 0.0
        %892 = vmatpush.msra.mxu0 0.0
        %893 = vmatpush.msra.mxu0 0.0
        %894 = vmatpush.msra.mxu0 0.0
        %895 = vmatpush.msra.mxu0 0.0
        %896 = vmatpush.msra.mxu0 0.0
        %897 = vmatpush.msra.mxu0 0.0
        %898 = vmatpush.msra.mxu0 0.0
        %899 = vmatpush.msra.mxu0 0.0
        %900 = vmatpush.msra.mxu0 0.0
        %901 = vmatpush.msra.mxu0 0.0
        %902 = vmatpush.msra.mxu0 0.0
        %903 = vmatpush.msra.mxu0 0.0
        %904 = vmatpush.msra.mxu0 0.0
        %905 = vmatpush.msra.mxu0 0.0
        %906 = vmatpush.msra.mxu0 %v886
        %907 = vmatmul.f32.gmra.mxu0 %v883
        %v908 = vpop.f32.mrf.mxu0
        %v909 = vadd.f32 %v860, %v908
        %910 = vdwg.mxu0
        %911 = vmatpush.msra.mxu0 0.0
        %912 = vmatpush.msra.mxu0 0.0
        %913 = vmatpush.msra.mxu0 0.0
        %914 = vmatpush.msra.mxu0 0.0
        %915 = vmatpush.msra.mxu0 0.0
        %916 = vmatpush.msra.mxu0 0.0
        %917 = vmatpush.msra.mxu0 0.0
        %918 = vmatpush.msra.mxu0 0.0
        %919 = vmatpush.msra.mxu0 0.0
        %920 = vmatpush.msra.mxu0 0.0
        %921 = vmatpush.msra.mxu0 0.0
        %922 = vmatpush.msra.mxu0 0.0
        %923 = vmatpush.msra.mxu0 0.0
        %924 = vmatpush.msra.mxu0 0.0
        %925 = vmatpush.msra.mxu0 0.0
        %926 = vmatpush.msra.mxu0 %v889
        %927 = vmatmul.f32.gmra.mxu0 %v883
        %v928 = vpop.f32.mrf.mxu0
        %v929 = vadd.f32 %v880, %v928
        %930 = vdwg.mxu0
        %s931 = scalar_lea.vmem %s1, 44
        %v932 = vld [vmem:[%s931] sm:$0xf]
        %v934 = vsel %vm243, %v932, 0
        %v937 = vsel %vm247, %v827, 0
        %v940 = vsel %vm247, %v828, 0
        %942 = vmatpush.msra.mxu0 0.0
        %943 = vmatpush.msra.mxu0 0.0
        %944 = vmatpush.msra.mxu0 0.0
        %945 = vmatpush.msra.mxu0 0.0
        %946 = vmatpush.msra.mxu0 0.0
        %947 = vmatpush.msra.mxu0 0.0
        %948 = vmatpush.msra.mxu0 0.0
        %949 = vmatpush.msra.mxu0 0.0
        %950 = vmatpush.msra.mxu0 0.0
        %951 = vmatpush.msra.mxu0 0.0
        %952 = vmatpush.msra.mxu0 0.0
        %953 = vmatpush.msra.mxu0 0.0
        %954 = vmatpush.msra.mxu0 0.0
        %955 = vmatpush.msra.mxu0 0.0
        %956 = vmatpush.msra.mxu0 0.0
        %957 = vmatpush.msra.mxu0 %v937
        %958 = vmatmul.f32.gmra.mxu0 %v934
        %v959 = vpop.f32.mrf.mxu0
        %v960 = vadd.f32 0.0, %v959
        %961 = vdwg.mxu0
        %962 = vmatpush.msra.mxu0 0.0
        %963 = vmatpush.msra.mxu0 0.0
        %964 = vmatpush.msra.mxu0 0.0
        %965 = vmatpush.msra.mxu0 0.0
        %966 = vmatpush.msra.mxu0 0.0
        %967 = vmatpush.msra.mxu0 0.0
        %968 = vmatpush.msra.mxu0 0.0
        %969 = vmatpush.msra.mxu0 0.0
        %970 = vmatpush.msra.mxu0 0.0
        %971 = vmatpush.msra.mxu0 0.0
        %972 = vmatpush.msra.mxu0 0.0
        %973 = vmatpush.msra.mxu0 0.0
        %974 = vmatpush.msra.mxu0 0.0
        %975 = vmatpush.msra.mxu0 0.0
        %976 = vmatpush.msra.mxu0 0.0
        %977 = vmatpush.msra.mxu0 %v940
        %978 = vmatmul.f32.gmra.mxu0 %v934
        %v979 = vpop.f32.mrf.mxu0
        %v980 = vadd.f32 0.0, %v979
        %981 = vdwg.mxu0
        %v982 = vadd.f32 %v909, %v960
        %v983 = vadd.f32 %v929, %v980
        %984 = vrot.lane.b32.xlu0 %v795, 1
        %v985 = vpop.permute.xlu0 %984
        %986 = vrot.lane.b32.xlu0 %v796, 1
        %v987 = vpop.permute.xlu0 %986
        %v988 = vsel %vm218, %v985, %v987
        %v989 = vsel %vm218, %v987, %v985
        %990 = vrot.lane.b32.xlu0 %v795, 127
        %v991 = vpop.permute.xlu0 %990
        %992 = vrot.lane.b32.xlu0 %v796, 127
        %v993 = vpop.permute.xlu0 %992
        %v994 = vsel %vm225, %v991, %v993
        %v995 = vsel %vm225, %v993, %v991
        %v996 = vsel %vm230, %v994, %v989
        %v997 = vsel %vm231, %v995, %v988
        %v998 = vsel %vm236, %v989, %v994
        %v999 = vsel %vm237, %v988, %v995
        %s1000 = scalar_lea.vmem %s1, 48
        %v1001 = vld [vmem:[%s1000] sm:$0xf]
        %v1003 = vsel %vm243, %v1001, 0
        %v1006 = vsel %vm247, %v996, 0
        %v1009 = vsel %vm247, %v997, 0
        %1011 = vmatpush.msra.mxu0 0.0
        %1012 = vmatpush.msra.mxu0 0.0
        %1013 = vmatpush.msra.mxu0 0.0
        %1014 = vmatpush.msra.mxu0 0.0
        %1015 = vmatpush.msra.mxu0 0.0
        %1016 = vmatpush.msra.mxu0 0.0
        %1017 = vmatpush.msra.mxu0 0.0
        %1018 = vmatpush.msra.mxu0 0.0
        %1019 = vmatpush.msra.mxu0 0.0
        %1020 = vmatpush.msra.mxu0 0.0
        %1021 = vmatpush.msra.mxu0 0.0
        %1022 = vmatpush.msra.mxu0 0.0
        %1023 = vmatpush.msra.mxu0 0.0
        %1024 = vmatpush.msra.mxu0 0.0
        %1025 = vmatpush.msra.mxu0 0.0
        %1026 = vmatpush.msra.mxu0 %v1006
        %1027 = vmatmul.f32.gmra.mxu0 %v1003
        %v1028 = vpop.f32.mrf.mxu0
        %v1029 = vadd.f32 0.0, %v1028
        %1030 = vdwg.mxu0
        %1031 = vmatpush.msra.mxu0 0.0
        %1032 = vmatpush.msra.mxu0 0.0
        %1033 = vmatpush.msra.mxu0 0.0
        %1034 = vmatpush.msra.mxu0 0.0
        %1035 = vmatpush.msra.mxu0 0.0
        %1036 = vmatpush.msra.mxu0 0.0
        %1037 = vmatpush.msra.mxu0 0.0
        %1038 = vmatpush.msra.mxu0 0.0
        %1039 = vmatpush.msra.mxu0 0.0
        %1040 = vmatpush.msra.mxu0 0.0
        %1041 = vmatpush.msra.mxu0 0.0
        %1042 = vmatpush.msra.mxu0 0.0
        %1043 = vmatpush.msra.mxu0 0.0
        %1044 = vmatpush.msra.mxu0 0.0
        %1045 = vmatpush.msra.mxu0 0.0
        %1046 = vmatpush.msra.mxu0 %v1009
        %1047 = vmatmul.f32.gmra.mxu0 %v1003
        %v1048 = vpop.f32.mrf.mxu0
        %v1049 = vadd.f32 0.0, %v1048
        %1050 = vdwg.mxu0
        %v1051 = vadd.f32 %v982, %v1029
        %v1052 = vadd.f32 %v983, %v1049
        %s1053 = scalar_lea.vmem %s1, 52
        %v1054 = vld [vmem:[%s1053] sm:$0xf]
        %v1056 = vsel %vm243, %v1054, 0
        %v1059 = vsel %vm247, %v795, 0
        %v1062 = vsel %vm247, %v796, 0
        %1064 = vmatpush.msra.mxu0 0.0
        %1065 = vmatpush.msra.mxu0 0.0
        %1066 = vmatpush.msra.mxu0 0.0
        %1067 = vmatpush.msra.mxu0 0.0
        %1068 = vmatpush.msra.mxu0 0.0
        %1069 = vmatpush.msra.mxu0 0.0
        %1070 = vmatpush.msra.mxu0 0.0
        %1071 = vmatpush.msra.mxu0 0.0
        %1072 = vmatpush.msra.mxu0 0.0
        %1073 = vmatpush.msra.mxu0 0.0
        %1074 = vmatpush.msra.mxu0 0.0
        %1075 = vmatpush.msra.mxu0 0.0
        %1076 = vmatpush.msra.mxu0 0.0
        %1077 = vmatpush.msra.mxu0 0.0
        %1078 = vmatpush.msra.mxu0 0.0
        %1079 = vmatpush.msra.mxu0 %v1059
        %1080 = vmatmul.f32.gmra.mxu0 %v1056
        %v1081 = vpop.f32.mrf.mxu0
        %v1082 = vadd.f32 0.0, %v1081
        %1083 = vdwg.mxu0
        %1084 = vmatpush.msra.mxu0 0.0
        %1085 = vmatpush.msra.mxu0 0.0
        %1086 = vmatpush.msra.mxu0 0.0
        %1087 = vmatpush.msra.mxu0 0.0
        %1088 = vmatpush.msra.mxu0 0.0
        %1089 = vmatpush.msra.mxu0 0.0
        %1090 = vmatpush.msra.mxu0 0.0
        %1091 = vmatpush.msra.mxu0 0.0
        %1092 = vmatpush.msra.mxu0 0.0
        %1093 = vmatpush.msra.mxu0 0.0
        %1094 = vmatpush.msra.mxu0 0.0
        %1095 = vmatpush.msra.mxu0 0.0
        %1096 = vmatpush.msra.mxu0 0.0
        %1097 = vmatpush.msra.mxu0 0.0
        %1098 = vmatpush.msra.mxu0 0.0
        %1099 = vmatpush.msra.mxu0 %v1062
        %1100 = vmatmul.f32.gmra.mxu0 %v1056
        %v1101 = vpop.f32.mrf.mxu0
        %v1102 = vadd.f32 0.0, %v1101
        %1103 = vdwg.mxu0
        %v1104 = vadd.f32 %v1051, %v1082
        %v1105 = vadd.f32 %v1052, %v1102
        %s1106 = scalar_lea.vmem %s1, 56
        %v1107 = vld [vmem:[%s1106] sm:$0xf]
        %v1109 = vsel %vm243, %v1107, 0
        %v1112 = vsel %vm247, %v998, 0
        %v1115 = vsel %vm247, %v999, 0
        %1117 = vmatpush.msra.mxu0 0.0
        %1118 = vmatpush.msra.mxu0 0.0
        %1119 = vmatpush.msra.mxu0 0.0
        %1120 = vmatpush.msra.mxu0 0.0
        %1121 = vmatpush.msra.mxu0 0.0
        %1122 = vmatpush.msra.mxu0 0.0
        %1123 = vmatpush.msra.mxu0 0.0
        %1124 = vmatpush.msra.mxu0 0.0
        %1125 = vmatpush.msra.mxu0 0.0
        %1126 = vmatpush.msra.mxu0 0.0
        %1127 = vmatpush.msra.mxu0 0.0
        %1128 = vmatpush.msra.mxu0 0.0
        %1129 = vmatpush.msra.mxu0 0.0
        %1130 = vmatpush.msra.mxu0 0.0
        %1131 = vmatpush.msra.mxu0 0.0
        %1132 = vmatpush.msra.mxu0 %v1112
        %1133 = vmatmul.f32.gmra.mxu0 %v1109
        %v1134 = vpop.f32.mrf.mxu0
        %v1135 = vadd.f32 0.0, %v1134
        %1136 = vdwg.mxu0
        %1137 = vmatpush.msra.mxu0 0.0
        %1138 = vmatpush.msra.mxu0 0.0
        %1139 = vmatpush.msra.mxu0 0.0
        %1140 = vmatpush.msra.mxu0 0.0
        %1141 = vmatpush.msra.mxu0 0.0
        %1142 = vmatpush.msra.mxu0 0.0
        %1143 = vmatpush.msra.mxu0 0.0
        %1144 = vmatpush.msra.mxu0 0.0
        %1145 = vmatpush.msra.mxu0 0.0
        %1146 = vmatpush.msra.mxu0 0.0
        %1147 = vmatpush.msra.mxu0 0.0
        %1148 = vmatpush.msra.mxu0 0.0
        %1149 = vmatpush.msra.mxu0 0.0
        %1150 = vmatpush.msra.mxu0 0.0
        %1151 = vmatpush.msra.mxu0 0.0
        %1152 = vmatpush.msra.mxu0 %v1115
        %1153 = vmatmul.f32.gmra.mxu0 %v1109
        %v1154 = vpop.f32.mrf.mxu0
        %v1155 = vadd.f32 0.0, %v1154
        %1156 = vdwg.mxu0
        %v1157 = vadd.f32 %v1104, %v1135
        %v1158 = vadd.f32 %v1105, %v1155
        %1159 = vrot.lane.b32.xlu0 %v811, 1
        %v1160 = vpop.permute.xlu0 %1159
        %1161 = vrot.lane.b32.xlu0 %v812, 1
        %v1162 = vpop.permute.xlu0 %1161
        %v1163 = vsel %vm218, %v1160, %v1162
        %v1164 = vsel %vm218, %v1162, %v1160
        %1165 = vrot.lane.b32.xlu0 %v811, 127
        %v1166 = vpop.permute.xlu0 %1165
        %1167 = vrot.lane.b32.xlu0 %v812, 127
        %v1168 = vpop.permute.xlu0 %1167
        %v1169 = vsel %vm225, %v1166, %v1168
        %v1170 = vsel %vm225, %v1168, %v1166
        %v1171 = vsel %vm230, %v1169, %v1164
        %v1172 = vsel %vm231, %v1170, %v1163
        %v1173 = vsel %vm236, %v1164, %v1169
        %v1174 = vsel %vm237, %v1163, %v1170
        %s1175 = scalar_lea.vmem %s1, 60
        %v1176 = vld [vmem:[%s1175] sm:$0xf]
        %v1178 = vsel %vm243, %v1176, 0
        %v1181 = vsel %vm247, %v1171, 0
        %v1184 = vsel %vm247, %v1172, 0
        %1186 = vmatpush.msra.mxu0 0.0
        %1187 = vmatpush.msra.mxu0 0.0
        %1188 = vmatpush.msra.mxu0 0.0
        %1189 = vmatpush.msra.mxu0 0.0
        %1190 = vmatpush.msra.mxu0 0.0
        %1191 = vmatpush.msra.mxu0 0.0
        %1192 = vmatpush.msra.mxu0 0.0
        %1193 = vmatpush.msra.mxu0 0.0
        %1194 = vmatpush.msra.mxu0 0.0
        %1195 = vmatpush.msra.mxu0 0.0
        %1196 = vmatpush.msra.mxu0 0.0
        %1197 = vmatpush.msra.mxu0 0.0
        %1198 = vmatpush.msra.mxu0 0.0
        %1199 = vmatpush.msra.mxu0 0.0
        %1200 = vmatpush.msra.mxu0 0.0
        %1201 = vmatpush.msra.mxu0 %v1181
        %1202 = vmatmul.f32.gmra.mxu0 %v1178
        %v1203 = vpop.f32.mrf.mxu0
        %v1204 = vadd.f32 0.0, %v1203
        %1205 = vdwg.mxu0
        %1206 = vmatpush.msra.mxu0 0.0
        %1207 = vmatpush.msra.mxu0 0.0
        %1208 = vmatpush.msra.mxu0 0.0
        %1209 = vmatpush.msra.mxu0 0.0
        %1210 = vmatpush.msra.mxu0 0.0
        %1211 = vmatpush.msra.mxu0 0.0
        %1212 = vmatpush.msra.mxu0 0.0
        %1213 = vmatpush.msra.mxu0 0.0
        %1214 = vmatpush.msra.mxu0 0.0
        %1215 = vmatpush.msra.mxu0 0.0
        %1216 = vmatpush.msra.mxu0 0.0
        %1217 = vmatpush.msra.mxu0 0.0
        %1218 = vmatpush.msra.mxu0 0.0
        %1219 = vmatpush.msra.mxu0 0.0
        %1220 = vmatpush.msra.mxu0 0.0
        %1221 = vmatpush.msra.mxu0 %v1184
        %1222 = vmatmul.f32.gmra.mxu0 %v1178
        %v1223 = vpop.f32.mrf.mxu0
        %v1224 = vadd.f32 0.0, %v1223
        %1225 = vdwg.mxu0
        %v1226 = vadd.f32 %v1157, %v1204
        %v1227 = vadd.f32 %v1158, %v1224
        %s1228 = scalar_lea.vmem %s1, 64
        %v1229 = vld [vmem:[%s1228] sm:$0xf]
        %v1231 = vsel %vm243, %v1229, 0
        %v1234 = vsel %vm247, %v811, 0
        %v1237 = vsel %vm247, %v812, 0
        %1239 = vmatpush.msra.mxu0 0.0
        %1240 = vmatpush.msra.mxu0 0.0
        %1241 = vmatpush.msra.mxu0 0.0
        %1242 = vmatpush.msra.mxu0 0.0
        %1243 = vmatpush.msra.mxu0 0.0
        %1244 = vmatpush.msra.mxu0 0.0
        %1245 = vmatpush.msra.mxu0 0.0
        %1246 = vmatpush.msra.mxu0 0.0
        %1247 = vmatpush.msra.mxu0 0.0
        %1248 = vmatpush.msra.mxu0 0.0
        %1249 = vmatpush.msra.mxu0 0.0
        %1250 = vmatpush.msra.mxu0 0.0
        %1251 = vmatpush.msra.mxu0 0.0
        %1252 = vmatpush.msra.mxu0 0.0
        %1253 = vmatpush.msra.mxu0 0.0
        %1254 = vmatpush.msra.mxu0 %v1234
        %1255 = vmatmul.f32.gmra.mxu0 %v1231
        %v1256 = vpop.f32.mrf.mxu0
        %v1257 = vadd.f32 0.0, %v1256
        %1258 = vdwg.mxu0
        %1259 = vmatpush.msra.mxu0 0.0
        %1260 = vmatpush.msra.mxu0 0.0
        %1261 = vmatpush.msra.mxu0 0.0
        %1262 = vmatpush.msra.mxu0 0.0
        %1263 = vmatpush.msra.mxu0 0.0
        %1264 = vmatpush.msra.mxu0 0.0
        %1265 = vmatpush.msra.mxu0 0.0
        %1266 = vmatpush.msra.mxu0 0.0
        %1267 = vmatpush.msra.mxu0 0.0
        %1268 = vmatpush.msra.mxu0 0.0
        %1269 = vmatpush.msra.mxu0 0.0
        %1270 = vmatpush.msra.mxu0 0.0
        %1271 = vmatpush.msra.mxu0 0.0
        %1272 = vmatpush.msra.mxu0 0.0
        %1273 = vmatpush.msra.mxu0 0.0
        %1274 = vmatpush.msra.mxu0 %v1237
        %1275 = vmatmul.f32.gmra.mxu0 %v1231
        %v1276 = vpop.f32.mrf.mxu0
        %v1277 = vadd.f32 0.0, %v1276
        %1278 = vdwg.mxu0
        %v1279 = vadd.f32 %v1226, %v1257
        %v1280 = vadd.f32 %v1227, %v1277
        %s1281 = scalar_lea.vmem %s1, 68
        %v1282 = vld [vmem:[%s1281] sm:$0xf]
        %v1284 = vsel %vm243, %v1282, 0
        %v1287 = vsel %vm247, %v1173, 0
        %v1290 = vsel %vm247, %v1174, 0
        %1292 = vmatpush.msra.mxu0 0.0
        %1293 = vmatpush.msra.mxu0 0.0
        %1294 = vmatpush.msra.mxu0 0.0
        %1295 = vmatpush.msra.mxu0 0.0
        %1296 = vmatpush.msra.mxu0 0.0
        %1297 = vmatpush.msra.mxu0 0.0
        %1298 = vmatpush.msra.mxu0 0.0
        %1299 = vmatpush.msra.mxu0 0.0
        %1300 = vmatpush.msra.mxu0 0.0
        %1301 = vmatpush.msra.mxu0 0.0
        %1302 = vmatpush.msra.mxu0 0.0
        %1303 = vmatpush.msra.mxu0 0.0
        %1304 = vmatpush.msra.mxu0 0.0
        %1305 = vmatpush.msra.mxu0 0.0
        %1306 = vmatpush.msra.mxu0 0.0
        %1307 = vmatpush.msra.mxu0 %v1287
        %1308 = vmatmul.f32.gmra.mxu0 %v1284
        %v1309 = vpop.f32.mrf.mxu0
        %v1310 = vadd.f32 0.0, %v1309
        %1311 = vdwg.mxu0
        %1312 = vmatpush.msra.mxu0 0.0
        %1313 = vmatpush.msra.mxu0 0.0
        %1314 = vmatpush.msra.mxu0 0.0
        %1315 = vmatpush.msra.mxu0 0.0
        %1316 = vmatpush.msra.mxu0 0.0
        %1317 = vmatpush.msra.mxu0 0.0
        %1318 = vmatpush.msra.mxu0 0.0
        %1319 = vmatpush.msra.mxu0 0.0
        %1320 = vmatpush.msra.mxu0 0.0
        %1321 = vmatpush.msra.mxu0 0.0
        %1322 = vmatpush.msra.mxu0 0.0
        %1323 = vmatpush.msra.mxu0 0.0
        %1324 = vmatpush.msra.mxu0 0.0
        %1325 = vmatpush.msra.mxu0 0.0
        %1326 = vmatpush.msra.mxu0 0.0
        %1327 = vmatpush.msra.mxu0 %v1290
        %1328 = vmatmul.f32.gmra.mxu0 %v1284
        %v1329 = vpop.f32.mrf.mxu0
        %v1330 = vadd.f32 0.0, %v1329
        %1331 = vdwg.mxu0
        %v1332 = vadd.f32 %v1279, %v1310
        %v1333 = vadd.f32 %v1280, %v1330
        %v1334 = vsel %vm247, %v1332, 0.0
        %v1335 = vsel %vm247, %v1333, 0.0
        %v1336 = vadd.f32 %v1334, %v1335
        %1337 = vadd.xlane.f32.xlu0 %v1336
        %v1338 = vpop.xlane.xlu0 %1337
        %v1339 = vmul.f32 %v1338, %v768
        %v1340 = vmul.f32 %v1332, %v1332
        %v1341 = vmul.f32 %v1333, %v1333
        %v1342 = vsel %vm247, %v1340, 0.0
        %v1343 = vsel %vm247, %v1341, 0.0
        %v1344 = vadd.f32 %v1342, %v1343
        %1345 = vadd.xlane.f32.xlu0 %v1344
        %v1346 = vpop.xlane.xlu0 %1345
        %v1347 = vmul.f32 %v1346, %v768
        %v1348 = vmul.f32 %v1339, %v1339
        %v1349 = vsub.f32 %v1347, %v1348
        %v1350 = vsub.f32 %v1332, %v1339
        %v1351 = vsub.f32 %v1333, %v1339
        %v1352 = vadd.f32 %v1349, 1e-05
        %v1353 = vrsqrt.pop %v1352
        %v1354 = vmul.f32 %v1353, %v1352
        %v1355 = vmul.f32 %v1354, %v1353
        %v1356 = vmul.f32 0.5, %v1355
        %v1357 = vsub.f32 1.5, %v1356
        %v1358 = vmul.f32 %v1353, %v1357
        %vm1359 = vweird.f32 %v1352
        %vm1360 = vweird.f32 %v1353
        %vm1361 = vmor %vm1359, %vm1360
        %v1362 = vsel %vm1361, %v1353, %v1358
        %v1363 = vmul.f32 %v1350, %v1362
        %v1364 = vmul.f32 %v1351, %v1362
        %v1367 = vrot.slane %v1364, 4
        %v1368 = vsel %vm247, %v1363, %v1367
        %v1370 = vadd.f32 %v142, %v1368
        %1371 = vst [vmem:[%s136] sm:$0xff] %v1370
        %s1372 = sand.u32 %s71, 1
        %s1373 = scalar_lea.sflag [#allocation3], %s1372
        %s1374 = sand.u32 %s71, 1
        %s1375 = smul.addr %s1374, 8
        %s1376 = scalar_lea.vmem [#allocation2], %s1375
        // Predicated region
        $region29: #{tpu_custom_call.1} parent=27 // pred_check
          %p1377 = pneg %p81
        $region30: #{tpu_custom_call.1} parent=27 // pred_check_branch
          %1379 = sbr.rel (%p1377) target = $region32
        $region31: #{tpu_custom_call.1} parent=27 // pred_region
          %1381 = vsyncadd %s1373, 0
          %s1382 = smul.addr %s16, 2
          %s1383 = smul.addr %s1382, 4
          %s1384 = scalar_lea.hbm %s2, %s1383
          %s1386 = sshll.u32 %s1376, 4
          %s1387 = int_to_ptr.vmem [resolvable:$true] %s1386
          %s1388 = sshll.u32 %s1384, 4
          %s1389 = int_to_ptr.hbm [resolvable:$true] %s1388
          %1391 = dma.vmem_to_hbm [thread:$0]  %s1387, 128, %s1389, %s1373
        $region32: #{tpu_custom_call.1} parent=27 // pred_fallthru
          _
      $region28: #{tpu_custom_call.1} parent=5 // pred_fallthru
        _
      %p1392 = scmp.le.s32.totalorder 2, %s11
      // Predicated region
      $region33: #{tpu_custom_call.1} parent=5 // pred_check
        %p1393 = pneg %p1392
      $region34: #{tpu_custom_call.1} parent=5 // pred_check_branch
        %1395 = sbr.rel (%p1393) target = $region36
      $region35: #{tpu_custom_call.1} parent=5 // pred_region
        %s1396 = ssub.s32 %s11, 2
        // Predicated region
        $region37: #{tpu_custom_call.1} parent=35 // pred_check
          %p1397 = pneg %p87
        $region38: #{tpu_custom_call.1} parent=35 // pred_check_branch
          %1399 = sbr.rel (%p1397) target = $region40
        $region39: #{tpu_custom_call.1} parent=35 // pred_region
          %s1400 = sand.u32 %s72, 1
          %s1401 = scalar_lea.sflag [#allocation3], %s1400
          %s1402 = sand.u32 %s72, 1
          %s1403 = smul.addr %s1402, 8
          %s1404 = scalar_lea.vmem [#allocation2], %s1403
          %1406 = dma.done %s1401, 128
        $region40: #{tpu_custom_call.1} parent=35 // pred_fallthru
          _
      $region36: #{tpu_custom_call.1} parent=5 // pred_fallthru
        _
    $region6: #{tpu_custom_call.1} parent=1 // loop_footer
      %s15 = sadd.s32 1, %s11
    $region7: #{tpu_custom_call.1} parent=1 // loop_footer_branch
      %10 = sbr.rel target = $region3
    $region8: #{tpu_custom_call.1} parent=1 // loop_exit
      _
    %1407 = vsyncpa [#allocation3], 1
    %s1408 = scalar_lea.sflag [#allocation3], 1
    %1409 = vsyncpa %s1408, 1

</llo_original>
